<compile_context>
chip_gen: v7x
topology: tpu7x:2x2x1
jax: 0.10.0
libtpu: 0.0.40
codegen_flags: <defaults>
</compile_context>

<pallas_src>
import functools

import numpy as np
import jax
import jax.numpy as jnp
from jax import lax
from jax.experimental import pallas as pl
from jax.experimental.pallas import tpu as pltpu


IN_C = 3
OUT_C = 16
KSIZE = 3


# ----------------------------- Pallas kernel ------------------------------

def _conv3x3_silu_kernel(img_ref, w_ref, b_ref, o_ref, *, row_tile, W, C):
    """Fused im2col + GEMM + bias + SiLU for one row tile of one image.

    img_ref: (H+2, W+2, C)        bf16  whole padded image (resident per batch)
    w_ref:   (9*C, OUT_C)         bf16  folded conv weight, rows ordered (kh,kw,c)
    b_ref:   (1,   OUT_C)         f32   bias
    o_ref:   (row_tile*W, OUT_C)  f32   conv+SiLU output rows (h-major, w-minor)
    """
    row0 = pl.program_id(1) * row_tile   # first output row of this tile

    # im2col in VMEM: 9 shifted windows -> (row_tile*W, 9*C) patch matrix.
    # Windows are loaded straight from the resident image block; patch
    # building is done in f32 (safe 8-sublane layout for the (T,W,C)->(T*W,C)
    # collapse), then cast to bf16 right before the MXU.
    cols = []
    for di in range(KSIZE):
        for dj in range(KSIZE):
            sl = img_ref[pl.ds(row0 + di, row_tile), pl.ds(dj, W), :]
            cols.append(sl.astype(jnp.float32).reshape(row_tile * W, C))
    patches = jnp.concatenate(cols, axis=-1)              # (row_tile*W, 9*C)

    # GEMM on the MXU: bf16 inputs, f32 accumulate.  K=27, N=16 (no padding).
    acc = jnp.dot(patches.astype(jnp.bfloat16), w_ref[...],
                  preferred_element_type=jnp.float32)     # (row_tile*W, OUT_C)
    acc = acc + b_ref[...]

    # SiLU: x * sigmoid(x); exp and the approximate reciprocal both run on
    # the EUP slot, keeping VALU free.
    sig = pl.reciprocal(1.0 + jnp.exp(-acc), approx=True)
    o_ref[...] = acc * sig


def _conv3x3_silu(x_pad, w_gemm, bias2d, row_tile):
    """x_pad: (B, H+2, W+2, C) bf16 -> (B, H*W, OUT_C) f32."""
    B, Hp2, Wp2, C = x_pad.shape
    H, W = Hp2 - 2, Wp2 - 2
    K, N = w_gemm.shape
    # W multiple of 8 keeps the in-kernel (T, W, C) -> (T*W, C) collapse a
    # pure sublane-tile restack (yolov8 inputs are multiples of 32 anyway).
    assert W % 8 == 0, "width must be a multiple of 8"
    assert H % row_tile == 0, "row_tile must divide H"

    kernel = functools.partial(_conv3x3_silu_kernel,
                               row_tile=row_tile, W=W, C=C)
    return pl.pallas_call(
        kernel,
        out_shape=jax.ShapeDtypeStruct((B, H * W, N), jnp.float32),
        grid_spec=pltpu.PrefetchScalarGridSpec(
            num_scalar_prefetch=0,
            grid=(B, H // row_tile),
            in_specs=[
                # whole padded image; index map is constant in the row-tile
                # axis so it is DMA'd once per batch and reused.
                pl.BlockSpec((None, Hp2, Wp2, C), lambda b, t: (b, 0, 0, 0)),
                pl.BlockSpec((K, N), lambda b, t: (0, 0)),   # resident weight
                pl.BlockSpec((1, N), lambda b, t: (0, 0)),   # resident bias
            ],
            out_specs=pl.BlockSpec((None, row_tile * W, N),
                                   lambda b, t: (b, t, 0)),
        ),
        # batch axis "parallel" -> shards across v7x's two TensorCores.
        compiler_params=pltpu.CompilerParams(
            dimension_semantics=("parallel", "arbitrary")),
    )(x_pad, w_gemm, bias2d)


def _pick_row_tile(H, W, n_out, bytes_budget=4 << 20):
    """Largest divisor of H whose f32 output tile fits the per-step budget."""
    per_row_bytes = W * n_out * 4
    max_rows = max(1, bytes_budget // per_row_bytes)
    best = 1
    for cand in range(1, H + 1):
        if H % cand == 0 and cand <= max_rows:
            best = cand
    return best


# ------------------------------ glue (JAX) --------------------------------

@functools.partial(jax.jit, static_argnames=("row_tile",))
def _forward_impl(image_nchw, w_gemm, bias2d, row_tile):
    B, C, H, W = image_nchw.shape
    x = jnp.transpose(image_nchw, (0, 2, 3, 1))              # NHWC
    x = jnp.pad(x, ((0, 0), (1, 1), (1, 1), (0, 0)))         # spatial pad 1
    x = x.astype(jnp.bfloat16)                                # halve HBM read
    out = _conv3x3_silu(x, w_gemm, bias2d, row_tile)          # (B, H*W, OC)
    out = out.reshape(B, H, W, OUT_C)
    return jnp.transpose(out, (0, 3, 1, 2))                   # NCHW


class TensorRTInferenceModelPallas:
    """Synthetic stand-in for the TensorRT engine wrapper."""

    def __init__(self, key):
        kw, kb = jax.random.split(key)
        # conv weight in PyTorch layout (OC, C, kh, kw), bias (OC,)
        self.w_oc_c_kk = (jax.random.normal(
            kw, (OUT_C, IN_C, KSIZE, KSIZE), jnp.float32) * 0.1)
        self.b = jax.random.normal(kb, (OUT_C,), jnp.float32) * 0.1

        # fold into GEMM weight: rows ordered (kh, kw, c) to match the
        # in-kernel im2col order; keep K=27 / N=16 (no lane padding), bf16.
        w_gemm = jnp.transpose(self.w_oc_c_kk, (2, 3, 1, 0)).reshape(
            KSIZE * KSIZE * IN_C, OUT_C)                      # (27, 16)
        self.w_gemm = w_gemm.astype(jnp.bfloat16)
        self.b2d = self.b.reshape(1, OUT_C)                    # f32 bias

    def forward(self, image_nchw, row_tile=None):
        """image: NCHW float32.  Returns list of numpy output arrays (NCHW)."""
        B, C, H, W = image_nchw.shape
        assert C == IN_C
        if row_tile is None:
            row_tile = _pick_row_tile(H, W, OUT_C)
        out_nchw = _forward_impl(jnp.asarray(image_nchw, jnp.float32),
                                 self.w_gemm, self.b2d, row_tile)
        return [np.asarray(out_nchw)]


# ------------------------------- reference --------------------------------

def _reference_forward(model, image_nchw):
    # f32 conv + SiLU on bf16-rounded operands (mirrors the kernel's bf16
    # HBM streams); accumulation-order and approx-reciprocal differences are
    # covered by the test tolerance.
    x = image_nchw.astype(jnp.bfloat16).astype(jnp.float32)
    w = model.w_oc_c_kk.astype(jnp.bfloat16).astype(jnp.float32)
    y = lax.conv_general_dilated(
        x, w, window_strides=(1, 1), padding=((1, 1), (1, 1)),
        dimension_numbers=("NCHW", "OIHW", "NCHW"))
    y = y + model.b[None, :, None, None]
    return y * jax.nn.sigmoid(y)


if __name__ == "__main__":
    key = jax.random.PRNGKey(0)
    k_model, k_img = jax.random.split(key)

    model = TensorRTInferenceModelPallas(k_model)

    # small NCHW image consistent with the yolov8 engine input convention
    image = jax.random.normal(k_img, (2, IN_C, 16, 16), jnp.float32)

    ref = np.asarray(_reference_forward(model, image))

    # default path: auto row tile (whole image per grid step), grid = (B, 1)
    outputs = model.forward(image)
    out = outputs[0]
    jax.block_until_ready(jnp.asarray(out))
    assert out.shape == (2, OUT_C, 16, 16)
    assert np.allclose(out, ref, atol=2e-2, rtol=2e-2), float(
        np.max(np.abs(out - ref)))

    # also exercise the multi-row-tile path (grid = (B, H // 8))
    out_tiled = model.forward(image, row_tile=8)[0]
    assert np.allclose(out_tiled, ref, atol=2e-2, rtol=2e-2), float(
        np.max(np.abs(out_tiled - ref)))

    print("KERNEL_OK")
</pallas_src>

<mosaic_0001>
module attributes {stable_mosaic.version = 11 : i64} {
  func.func @_conv3x3_silu_kernel(%arg0: i32, %arg1: i32, %arg2: memref<1x18x18x3xbf16, #tpu.memory_space<vmem>>, %arg3: memref<27x16xbf16, #tpu.memory_space<vmem>>, %arg4: memref<1x16xf32, #tpu.memory_space<vmem>>, %arg5: memref<1x256x16xf32, #tpu.memory_space<vmem>>) attributes {dimension_semantics = [#tpu.dimension_semantics<parallel>, #tpu.dimension_semantics<arbitrary>], iteration_bounds = array<i64: 2, 1>, scalar_prefetch = 0 : i64, scratch_operands = 0 : i64, tpu.core_type = #tpu.core_type<tc>, window_params = [{transform_indices = @transform_0, window_bounds = array<i64: 1, 18, 18, 3>}, {pipeline_mode = #tpu.pipeline_mode<synchronous>, transform_indices = @transform_1, window_bounds = array<i64: 27, 16>}, {pipeline_mode = #tpu.pipeline_mode<synchronous>, transform_indices = @transform_2, window_bounds = array<i64: 1, 16>}, {transform_indices = @transform_3, window_bounds = array<i64: 1, 256, 16>}]} {
    %c16_i32 = arith.constant 16 : i32
    %0 = arith.muli %arg1, %c16_i32 : i32
    %c0_i32 = arith.constant 0 : i32
    %1 = arith.addi %0, %c0_i32 : i32
    %c0 = arith.constant 0 : index
    %2 = arith.index_cast %1 : i32 to index
    %c0_0 = arith.constant 0 : index
    %c0_1 = arith.constant 0 : index
    %3 = vector.load %arg2[%c0, %2, %c0_0, %c0_1] : memref<1x18x18x3xbf16, #tpu.memory_space<vmem>>, vector<1x16x16x3xbf16>
    %4 = vector.shape_cast %3 : vector<1x16x16x3xbf16> to vector<16x16x3xbf16>
    %5 = arith.extf %4 : vector<16x16x3xbf16> to vector<16x16x3xf32>
    %6 = vector.shape_cast %5 : vector<16x16x3xf32> to vector<256x3xf32>
    %c0_i32_2 = arith.constant 0 : i32
    %7 = arith.addi %0, %c0_i32_2 : i32
    %c0_3 = arith.constant 0 : index
    %8 = arith.index_cast %7 : i32 to index
    %c1 = arith.constant 1 : index
    %c0_4 = arith.constant 0 : index
    %9 = vector.load %arg2[%c0_3, %8, %c1, %c0_4] : memref<1x18x18x3xbf16, #tpu.memory_space<vmem>>, vector<1x16x16x3xbf16>
    %10 = vector.shape_cast %9 : vector<1x16x16x3xbf16> to vector<16x16x3xbf16>
    %11 = arith.extf %10 : vector<16x16x3xbf16> to vector<16x16x3xf32>
    %12 = vector.shape_cast %11 : vector<16x16x3xf32> to vector<256x3xf32>
    %c0_i32_5 = arith.constant 0 : i32
    %13 = arith.addi %0, %c0_i32_5 : i32
    %c0_6 = arith.constant 0 : index
    %14 = arith.index_cast %13 : i32 to index
    %c2 = arith.constant 2 : index
    %c0_7 = arith.constant 0 : index
    %15 = vector.load %arg2[%c0_6, %14, %c2, %c0_7] : memref<1x18x18x3xbf16, #tpu.memory_space<vmem>>, vector<1x16x16x3xbf16>
    %16 = vector.shape_cast %15 : vector<1x16x16x3xbf16> to vector<16x16x3xbf16>
    %17 = arith.extf %16 : vector<16x16x3xbf16> to vector<16x16x3xf32>
    %18 = vector.shape_cast %17 : vector<16x16x3xf32> to vector<256x3xf32>
    %c1_i32 = arith.constant 1 : i32
    %19 = arith.addi %0, %c1_i32 : i32
    %c0_8 = arith.constant 0 : index
    %20 = arith.index_cast %19 : i32 to index
    %c0_9 = arith.constant 0 : index
    %c0_10 = arith.constant 0 : index
    %21 = vector.load %arg2[%c0_8, %20, %c0_9, %c0_10] : memref<1x18x18x3xbf16, #tpu.memory_space<vmem>>, vector<1x16x16x3xbf16>
    %22 = vector.shape_cast %21 : vector<1x16x16x3xbf16> to vector<16x16x3xbf16>
    %23 = arith.extf %22 : vector<16x16x3xbf16> to vector<16x16x3xf32>
    %24 = vector.shape_cast %23 : vector<16x16x3xf32> to vector<256x3xf32>
    %c1_i32_11 = arith.constant 1 : i32
    %25 = arith.addi %0, %c1_i32_11 : i32
    %c0_12 = arith.constant 0 : index
    %26 = arith.index_cast %25 : i32 to index
    %c1_13 = arith.constant 1 : index
    %c0_14 = arith.constant 0 : index
    %27 = vector.load %arg2[%c0_12, %26, %c1_13, %c0_14] : memref<1x18x18x3xbf16, #tpu.memory_space<vmem>>, vector<1x16x16x3xbf16>
    %28 = vector.shape_cast %27 : vector<1x16x16x3xbf16> to vector<16x16x3xbf16>
    %29 = arith.extf %28 : vector<16x16x3xbf16> to vector<16x16x3xf32>
    %30 = vector.shape_cast %29 : vector<16x16x3xf32> to vector<256x3xf32>
    %c1_i32_15 = arith.constant 1 : i32
    %31 = arith.addi %0, %c1_i32_15 : i32
    %c0_16 = arith.constant 0 : index
    %32 = arith.index_cast %31 : i32 to index
    %c2_17 = arith.constant 2 : index
    %c0_18 = arith.constant 0 : index
    %33 = vector.load %arg2[%c0_16, %32, %c2_17, %c0_18] : memref<1x18x18x3xbf16, #tpu.memory_space<vmem>>, vector<1x16x16x3xbf16>
    %34 = vector.shape_cast %33 : vector<1x16x16x3xbf16> to vector<16x16x3xbf16>
    %35 = arith.extf %34 : vector<16x16x3xbf16> to vector<16x16x3xf32>
    %36 = vector.shape_cast %35 : vector<16x16x3xf32> to vector<256x3xf32>
    %c2_i32 = arith.constant 2 : i32
    %37 = arith.addi %0, %c2_i32 : i32
    %c0_19 = arith.constant 0 : index
    %38 = arith.index_cast %37 : i32 to index
    %c0_20 = arith.constant 0 : index
    %c0_21 = arith.constant 0 : index
    %39 = vector.load %arg2[%c0_19, %38, %c0_20, %c0_21] : memref<1x18x18x3xbf16, #tpu.memory_space<vmem>>, vector<1x16x16x3xbf16>
    %40 = vector.shape_cast %39 : vector<1x16x16x3xbf16> to vector<16x16x3xbf16>
    %41 = arith.extf %40 : vector<16x16x3xbf16> to vector<16x16x3xf32>
    %42 = vector.shape_cast %41 : vector<16x16x3xf32> to vector<256x3xf32>
    %c2_i32_22 = arith.constant 2 : i32
    %43 = arith.addi %0, %c2_i32_22 : i32
    %c0_23 = arith.constant 0 : index
    %44 = arith.index_cast %43 : i32 to index
    %c1_24 = arith.constant 1 : index
    %c0_25 = arith.constant 0 : index
    %45 = vector.load %arg2[%c0_23, %44, %c1_24, %c0_25] : memref<1x18x18x3xbf16, #tpu.memory_space<vmem>>, vector<1x16x16x3xbf16>
    %46 = vector.shape_cast %45 : vector<1x16x16x3xbf16> to vector<16x16x3xbf16>
    %47 = arith.extf %46 : vector<16x16x3xbf16> to vector<16x16x3xf32>
    %48 = vector.shape_cast %47 : vector<16x16x3xf32> to vector<256x3xf32>
    %c2_i32_26 = arith.constant 2 : i32
    %49 = arith.addi %0, %c2_i32_26 : i32
    %c0_27 = arith.constant 0 : index
    %50 = arith.index_cast %49 : i32 to index
    %c2_28 = arith.constant 2 : index
    %c0_29 = arith.constant 0 : index
    %51 = vector.load %arg2[%c0_27, %50, %c2_28, %c0_29] : memref<1x18x18x3xbf16, #tpu.memory_space<vmem>>, vector<1x16x16x3xbf16>
    %52 = vector.shape_cast %51 : vector<1x16x16x3xbf16> to vector<16x16x3xbf16>
    %53 = arith.extf %52 : vector<16x16x3xbf16> to vector<16x16x3xf32>
    %54 = vector.shape_cast %53 : vector<16x16x3xf32> to vector<256x3xf32>
    %55 = tpu.concatenate %6, %12, %18, %24, %30, %36, %42, %48, %54 in 1 : vector<256x3xf32>, vector<256x3xf32>, vector<256x3xf32>, vector<256x3xf32>, vector<256x3xf32>, vector<256x3xf32>, vector<256x3xf32>, vector<256x3xf32>, vector<256x3xf32> -> vector<256x27xf32>
    %56 = arith.truncf %55 : vector<256x27xf32> to vector<256x27xbf16>
    %c0_30 = arith.constant 0 : index
    %c0_31 = arith.constant 0 : index
    %57 = vector.load %arg3[%c0_30, %c0_31] : memref<27x16xbf16, #tpu.memory_space<vmem>>, vector<27x16xbf16>
    %cst = arith.constant dense<0.000000e+00> : vector<256x16xf32>
    %58 = tpu.matmul %56, %57, %cst {dimension_numbers = #tpu.dot_dimension_numbers<[1], [0], [0], [1], [0, 0, 1, 1], [], []>} : vector<256x27xbf16>, vector<27x16xbf16>, vector<256x16xf32> -> vector<256x16xf32>
    %c0_32 = arith.constant 0 : index
    %c0_33 = arith.constant 0 : index
    %59 = vector.load %arg4[%c0_32, %c0_33] : memref<1x16xf32, #tpu.memory_space<vmem>>, vector<1x16xf32>
    %60 = vector.broadcast %59 : vector<1x16xf32> to vector<256x16xf32>
    %61 = arith.addf %58, %60 : vector<256x16xf32>
    %cst_34 = arith.constant 0.000000e+00 : f32
    %62 = vector.broadcast %cst_34 : f32 to vector<256x16xf32>
    %63 = arith.subf %62, %61 : vector<256x16xf32>
    %64 = math.exp %63 : vector<256x16xf32>
    %cst_35 = arith.constant 1.000000e+00 : f32
    %65 = vector.broadcast %cst_35 : f32 to vector<256x16xf32>
    %66 = arith.addf %65, %64 : vector<256x16xf32>
    %67 = tpu.reciprocal %66 {approx = true} : vector<256x16xf32> -> vector<256x16xf32>
    %68 = arith.mulf %61, %67 : vector<256x16xf32>
    %c0_36 = arith.constant 0 : index
    %c0_37 = arith.constant 0 : index
    %c0_38 = arith.constant 0 : index
    %69 = vector.load %arg5[%c0_36, %c0_37, %c0_38] : memref<1x256x16xf32, #tpu.memory_space<vmem>>, vector<1x256x16xf32>
    %70 = vector.shape_cast %69 : vector<1x256x16xf32> to vector<256x16xf32>
    %71 = vector.shape_cast %68 : vector<256x16xf32> to vector<1x256x16xf32>
    tpu.vector_store %arg5[%c0_36, %c0_37, %c0_38], %71 {strides = array<i32>} : memref<1x256x16xf32, #tpu.memory_space<vmem>>, vector<1x256x16xf32>,
    return
  }
  func.func @transform_0(%arg0: i32, %arg1: i32) -> (i32, i32, i32, i32) {
    %c0_i32 = arith.constant 0 : i32
    %c0_i32_0 = arith.constant 0 : i32
    %c0_i32_1 = arith.constant 0 : i32
    %c0_i32_2 = arith.constant 0 : i32
    return %arg0, %c0_i32, %c0_i32_0, %c0_i32_1 : i32, i32, i32, i32
  }
  func.func @transform_1(%arg0: i32, %arg1: i32) -> (i32, i32) {
    %c0_i32 = arith.constant 0 : i32
    %c0_i32_0 = arith.constant 0 : i32
    %c0_i32_1 = arith.constant 0 : i32
    return %c0_i32, %c0_i32_0 : i32, i32
  }
  func.func @transform_2(%arg0: i32, %arg1: i32) -> (i32, i32) {
    %c0_i32 = arith.constant 0 : i32
    %c0_i32_0 = arith.constant 0 : i32
    %c0_i32_1 = arith.constant 0 : i32
    return %c0_i32, %c0_i32_0 : i32, i32
  }
  func.func @transform_3(%arg0: i32, %arg1: i32) -> (i32, i32, i32) {
    %c0_i32 = arith.constant 0 : i32
    %c0_i32_0 = arith.constant 0 : i32
    return %arg0, %arg1, %c0_i32 : i32, i32, i32
  }
}

</mosaic_0001>

<llo_original>
// kernel: _forward_impl.1
$region0: #{_forward_impl.1}
  #allocation0 [shape = 'u32[]', space=smem, size = 0x4, offset = 0x4, fixed_abs, tag = 'smem constant byte address 0x4 - core index']
  #allocation1 [shape = 'u32[144,128]{1,0:T(1,128)}', space=vmem, size = 0x12000, scoped, tag = 'internal scratch']
  %s0 = inlined_call_operand.vmem [shape: bf16[2,18,18,3], index: 0, kind: input, shape index: {}]
  %s1 = inlined_call_operand.vmem [shape: bf16[27,16], index: 1, kind: input, shape index: {}]
  %s2 = inlined_call_operand.vmem [shape: f32[1,16], index: 2, kind: input, shape index: {}]
  %s3 = inlined_call_operand.vmem [shape: f32[2,256,16], index: 3, kind: output, shape index: {}]
  %s4 = sld [smem:[#allocation0]]
  $region45: #{_forward_impl.1} parent=0
    _
  %s6 = ssub.s32 1, %s4
  %s7 = scalar_select 0, %s6, %s4
  loop: start=0, step=1, limit=4
  $region2: #{_forward_impl.1} parent=0 // loop_pre_header
    _
  $region3: #{_forward_impl.1} parent=0 // loop_header
    %s9 = sphi 0, %s13
    %p10 = scmp.ge.s32.totalorder %s9, 4
    %s16 = sphi 0, %s28
    %s17 = sphi 0, %s24
    %s18 = sphi 0, %s16
    %s19 = sphi 0, %s17
    %s20 = sphi 0, %s18
    %s21 = sphi 0, %s19
    %s31 = sphi 0, %s33
    %s34 = sphi 0, %s31
    %s35 = sphi 0, %s34
    %s51 = sphi 0, %s35
    %s55 = sphi 0, %s55
    %s57 = sphi 0, %s55
    %s58 = sphi 0, %s57
    %s72 = sphi 0, %s58
    %s76 = sphi 0, %s76
    %s78 = sphi 0, %s76
    %s79 = sphi 0, %s78
    %s93 = sphi 0, %s79
    %s101 = sphi 0, %s103
    %s104 = sphi 0, %s101
    %s105 = sphi 0, %s104
    %s121 = sphi 0, %s105
  $region4: #{_forward_impl.1} parent=0 // loop_header_branch
    %12 = sbr.rel (%p10) target = $region8
  $region5: #{_forward_impl.1} parent=0 // loop_body
    %s14 = ssub.s32 %s9, 1
    %s15 = ssub.s32 %s9, 2
    %s22 = sadd.s32 1, %s17
    %p23 = scmp.ge.s32.totalorder %s22, 1
    %s24 = scalar_select %p23, 0, %s22
    %s25 = sadd.s32 1, %s16
    %s26 = scalar_select %p23, %s25, %s16
    %p27 = scmp.ge.s32.totalorder %s26, 2
    %s28 = scalar_select %p27, 0, %s26
    %s29 = ssub.s32 %s16, %s28
    %p30 = scmp.eq.s32.totalorder %s29, 0
    %s32 = sadd.s32 %s31, 1
    %s33 = scalar_select %p30, %s31, %s32
    %p36 = pneg %p30
    %p37 = scmp.eq.s32.totalorder %s9, 1
    %p38 = por %p36, %p37
    %p39 = scmp.ne.s32.totalorder %s31, %s34
    %p40 = scmp.eq.s32.totalorder %s9, 0
    %p41 = por %p39, %p40
    %p42 = scmp.ne.s32.totalorder %s31, %s34
    %p43 = scmp.eq.s32.totalorder %s14, 1
    %p44 = por %p42, %p43
    %p45 = scmp.ne.s32.totalorder %s34, %s35
    %p46 = scmp.eq.s32.totalorder %s14, 0
    %p47 = por %p45, %p46
    %p48 = scmp.ne.s32.totalorder %s34, %s35
    %p49 = scmp.eq.s32.totalorder %s15, 1
    %p50 = por %p48, %p49
    %p52 = scmp.ne.s32.totalorder %s35, %s51
    %p53 = scmp.eq.s32.totalorder %s15, 0
    %p54 = por %p52, %p53
    %s56 = sadd.s32 %s55, 1
    %p59 = scmp.eq.s32.totalorder %s9, 1
    %p60 = scmp.ne.s32.totalorder %s55, %s57
    %p61 = scmp.eq.s32.totalorder %s9, 0
    %p62 = por %p60, %p61
    %p63 = scmp.ne.s32.totalorder %s55, %s57
    %p64 = scmp.eq.s32.totalorder %s14, 1
    %p65 = por %p63, %p64
    %p66 = scmp.ne.s32.totalorder %s57, %s58
    %p67 = scmp.eq.s32.totalorder %s14, 0
    %p68 = por %p66, %p67
    %p69 = scmp.ne.s32.totalorder %s57, %s58
    %p70 = scmp.eq.s32.totalorder %s15, 1
    %p71 = por %p69, %p70
    %p73 = scmp.ne.s32.totalorder %s58, %s72
    %p74 = scmp.eq.s32.totalorder %s15, 0
    %p75 = por %p73, %p74
    %s77 = sadd.s32 %s76, 1
    %p80 = scmp.eq.s32.totalorder %s9, 1
    %p81 = scmp.ne.s32.totalorder %s76, %s78
    %p82 = scmp.eq.s32.totalorder %s9, 0
    %p83 = por %p81, %p82
    %p84 = scmp.ne.s32.totalorder %s76, %s78
    %p85 = scmp.eq.s32.totalorder %s14, 1
    %p86 = por %p84, %p85
    %p87 = scmp.ne.s32.totalorder %s78, %s79
    %p88 = scmp.eq.s32.totalorder %s14, 0
    %p89 = por %p87, %p88
    %p90 = scmp.ne.s32.totalorder %s78, %s79
    %p91 = scmp.eq.s32.totalorder %s15, 1
    %p92 = por %p90, %p91
    %p94 = scmp.ne.s32.totalorder %s79, %s93
    %p95 = scmp.eq.s32.totalorder %s15, 0
    %p96 = por %p94, %p95
    %s97 = ssub.s32 %s16, %s28
    %s98 = ssub.s32 %s17, %s24
    %s99 = sor.u32 %s97, %s98
    %p100 = scmp.eq.s32.totalorder %s99, 0
    %s102 = sadd.s32 %s101, 1
    %s103 = scalar_select %p100, %s101, %s102
    %p106 = pneg %p100
    %p107 = scmp.eq.s32.totalorder %s9, 1
    %p108 = por %p106, %p107
    %p109 = scmp.ne.s32.totalorder %s101, %s104
    %p110 = scmp.eq.s32.totalorder %s9, 0
    %p111 = por %p109, %p110
    %p112 = scmp.ne.s32.totalorder %s101, %s104
    %p113 = scmp.eq.s32.totalorder %s14, 1
    %p114 = por %p112, %p113
    %p115 = scmp.ne.s32.totalorder %s104, %s105
    %p116 = scmp.eq.s32.totalorder %s14, 0
    %p117 = por %p115, %p116
    %p118 = scmp.ne.s32.totalorder %s104, %s105
    %p119 = scmp.eq.s32.totalorder %s15, 1
    %p120 = por %p118, %p119
    %p122 = scmp.ne.s32.totalorder %s105, %s121
    %p123 = scmp.eq.s32.totalorder %s15, 0
    %p124 = por %p122, %p123
    %p125 = scmp.le.s32.totalorder 1, %s9
    %p126 = scmp.lt.s32.totalorder %s9, 3
    %p127 = pnand %p125, %p126
    %p128 = pneg %p127
    // Predicated region
    $region9: #{_forward_impl.1} parent=5 // pred_check
      _
    $region10: #{_forward_impl.1} parent=5 // pred_check_branch
      %130 = sbr.rel (%p127) target = $region12
    $region11: #{_forward_impl.1} parent=5 // pred_region
      %s131 = ssub.s32 %s9, 1
      // Predicated region
      $region13: #{_forward_impl.1} parent=11 // pred_check
        %p132 = pneg %p68
      $region14: #{_forward_impl.1} parent=11 // pred_check_branch
        %134 = sbr.rel (%p132) target = $region16
      $region15: #{_forward_impl.1} parent=11 // pred_region
        _
      $region16: #{_forward_impl.1} parent=11 // pred_fallthru
        _
      // Predicated region
      $region17: #{_forward_impl.1} parent=11 // pred_check
        %p135 = pneg %p89
      $region18: #{_forward_impl.1} parent=11 // pred_check_branch
        %137 = sbr.rel (%p135) target = $region20
      $region19: #{_forward_impl.1} parent=11 // pred_region
        _
      $region20: #{_forward_impl.1} parent=11 // pred_fallthru
        _
    $region12: #{_forward_impl.1} parent=5 // pred_fallthru
      _
    %p138 = scmp.lt.s32.totalorder %s9, 2
    // Predicated region
    $region21: #{_forward_impl.1} parent=5 // pred_check
      %p139 = pneg %p138
    $region22: #{_forward_impl.1} parent=5 // pred_check_branch
      %141 = sbr.rel (%p139) target = $region24
    $region23: #{_forward_impl.1} parent=5 // pred_region
      // Predicated region
      $region25: #{_forward_impl.1} parent=23 // pred_check
        %p142 = pneg %p41
      $region26: #{_forward_impl.1} parent=23 // pred_check_branch
        %144 = sbr.rel (%p142) target = $region28
      $region27: #{_forward_impl.1} parent=23 // pred_region
        %p145 = scmp.lt.s32.totalorder %s16, 1
        %s146 = scalar_select %p145, %s16, 1
        %s147 = smul.addr %s146, 54
        %s148 = smul.addr %s147, 4
        %s149 = scalar_lea.vmem %s0, %s148
      $region28: #{_forward_impl.1} parent=23 // pred_fallthru
        _
    $region24: #{_forward_impl.1} parent=5 // pred_fallthru
      _
    %p150 = scmp.le.s32.totalorder 1, %s9
    %p151 = scmp.lt.s32.totalorder %s9, 3
    %p152 = pnand %p150, %p151
    %p153 = pneg %p152
    // Predicated region
    $region29: #{_forward_impl.1} parent=5 // pred_check
      _
    $region30: #{_forward_impl.1} parent=5 // pred_check_branch
      %155 = sbr.rel (%p152) target = $region32
    $region31: #{_forward_impl.1} parent=5 // pred_region
      %s156 = ssub.s32 %s9, 1
      %p157 = scmp.lt.s32.totalorder %s18, 1
      %s158 = scalar_select %p157, %s18, 1
      %s159 = smul.addr %s158, 54
      %s160 = smul.addr %s159, 4
      %s161 = scalar_lea.vmem %s0, %s160
      %p162 = pneg %p47
      %p163 = pneg %p44
      %p164 = pneg %p68
      %p165 = pneg %p65
      %p166 = pneg %p89
      %p167 = pneg %p86
      %p168 = pneg %p117
      %p169 = pneg %p114
      %s170 = smul.u32 32, %s19
      %p171 = scmp.lt.s32.totalorder %s18, 1
      %s172 = scalar_select %p171, %s18, 1
      %p173 = scmp.lt.s32.totalorder %s170, 31
      %s174 = scalar_select %p173, %s170, 31
      %s175 = smul.addr %s172, 32
      %s176 = sadd.s32 %s174, %s175
      %s177 = smul.addr %s176, 8
      %s178 = scalar_lea.vmem %s3, %s177
      %p179 = scmp.lt.s32.totalorder %s18, 1
      %s180 = scalar_select %p179, %s18, 1
      %s181 = smul.addr %s180, 54
      %s182 = smul.addr %s181, 4
      %s183 = scalar_lea.vmem %s0, %s182
      %s184 = smul.u32 32, %s19
      %p185 = scmp.lt.s32.totalorder %s18, 1
      %s186 = scalar_select %p185, %s18, 1
      %p187 = scmp.lt.s32.totalorder %s184, 31
      %s188 = scalar_select %p187, %s184, 31
      %s189 = smul.addr %s186, 32
      %s190 = sadd.s32 %s188, %s189
      %s191 = smul.addr %s190, 8
      %s192 = scalar_lea.vmem %s3, %s191
      %s193 = smul.u32 32, %s19
      %s195 = smul.u32 %s19, 16
      %s196 = smul.u32 %s195, 3
      %s197 = smul.addr %s196, 4
      %s198 = scalar_lea.vmem %s183, %s197
      %v199 = vld [vmem:[%s198] sm:$0xf]
      %v200 = vld [vmem:[%s198 + $0x4] sm:$0xf]
      %v201 = vld [vmem:[%s198 + $0xc] sm:$0xf]
      %v202 = vld [vmem:[%s198 + $0x10] sm:$0xf]
      %v203 = vld [vmem:[%s198 + $0x18] sm:$0xf]
      %v204 = vld [vmem:[%s198 + $0x1c] sm:$0xf]
      %v205 = vld [vmem:[%s198 + $0x24] sm:$0xf]
      %v206 = vld [vmem:[%s198 + $0x28] sm:$0xf]
      %v207 = vld [vmem:[%s198 + $0x30] sm:$0xf]
      %v208 = vld [vmem:[%s198 + $0x34] sm:$0xf]
      %v209 = vld [vmem:[%s198 + $0x3c] sm:$0xf]
      %v210 = vld [vmem:[%s198 + $0x40] sm:$0xf]
      %v211 = vld [vmem:[%s198 + $0x48] sm:$0xf]
      %v212 = vld [vmem:[%s198 + $0x4c] sm:$0xf]
      %v213 = vld [vmem:[%s198 + $0x54] sm:$0xf]
      %v214 = vld [vmem:[%s198 + $0x58] sm:$0xf]
      %v215 = vld [vmem:[%s198 + $0x60] sm:$0xf]
      %v216 = vld [vmem:[%s198 + $0x64] sm:$0xf]
      %v217 = vld [vmem:[%s198 + $0x6c] sm:$0xf]
      %v218 = vld [vmem:[%s198 + $0x70] sm:$0xf]
      %v219 = vld [vmem:[%s198 + $0x78] sm:$0xf]
      %v220 = vld [vmem:[%s198 + $0x7c] sm:$0xf]
      %v221 = vld [vmem:[%s198 + $0x84] sm:$0xf]
      %v222 = vld [vmem:[%s198 + $0x88] sm:$0xf]
      %v223 = vld [vmem:[%s198 + $0x90] sm:$0xf]
      %v224 = vld [vmem:[%s198 + $0x94] sm:$0xf]
      %v225 = vld [vmem:[%s198 + $0x9c] sm:$0xf]
      %v226 = vld [vmem:[%s198 + $0xa0] sm:$0xf]
      %v227 = vld [vmem:[%s198 + $0xa8] sm:$0xf]
      %v228 = vld [vmem:[%s198 + $0xac] sm:$0xf]
      %v229 = vld [vmem:[%s198 + $0xb4] sm:$0xf]
      %v230 = vld [vmem:[%s198 + $0xb8] sm:$0xf]
      %v231 = vunpack.c.l.bf16 %v199
      %v232 = vunpack.c.l.bf16 %v200
      %v233 = vunpack.c.l.bf16 %v201
      %v234 = vunpack.c.l.bf16 %v202
      %v235 = vunpack.c.l.bf16 %v203
      %v236 = vunpack.c.l.bf16 %v204
      %v237 = vunpack.c.l.bf16 %v205
      %v238 = vunpack.c.l.bf16 %v206
      %v239 = vunpack.c.l.bf16 %v207
      %v240 = vunpack.c.l.bf16 %v208
      %v241 = vunpack.c.l.bf16 %v209
      %v242 = vunpack.c.l.bf16 %v210
      %v243 = vunpack.c.l.bf16 %v211
      %v244 = vunpack.c.l.bf16 %v212
      %v245 = vunpack.c.l.bf16 %v213
      %v246 = vunpack.c.l.bf16 %v214
      %v247 = vunpack.c.l.bf16 %v215
      %v248 = vunpack.c.l.bf16 %v216
      %v249 = vunpack.c.l.bf16 %v217
      %v250 = vunpack.c.l.bf16 %v218
      %v251 = vunpack.c.l.bf16 %v219
      %v252 = vunpack.c.l.bf16 %v220
      %v253 = vunpack.c.l.bf16 %v221
      %v254 = vunpack.c.l.bf16 %v222
      %v255 = vunpack.c.l.bf16 %v223
      %v256 = vunpack.c.l.bf16 %v224
      %v257 = vunpack.c.l.bf16 %v225
      %v258 = vunpack.c.l.bf16 %v226
      %v259 = vunpack.c.l.bf16 %v227
      %v260 = vunpack.c.l.bf16 %v228
      %v261 = vunpack.c.l.bf16 %v229
      %v262 = vunpack.c.l.bf16 %v230
      %v263 = vld [vmem:[%s198 + $0x8] sm:$0x1]
      %v264 = vld [vmem:[%s198 + $0x14] sm:$0x1]
      %v265 = vld [vmem:[%s198 + $0x20] sm:$0x1]
      %v266 = vld [vmem:[%s198 + $0x2c] sm:$0x1]
      %v267 = vld [vmem:[%s198 + $0x38] sm:$0x1]
      %v268 = vld [vmem:[%s198 + $0x44] sm:$0x1]
      %v269 = vld [vmem:[%s198 + $0x50] sm:$0x1]
      %v270 = vld [vmem:[%s198 + $0x5c] sm:$0x1]
      %v271 = vld [vmem:[%s198 + $0x68] sm:$0x1]
      %v272 = vld [vmem:[%s198 + $0x74] sm:$0x1]
      %v273 = vld [vmem:[%s198 + $0x80] sm:$0x1]
      %v274 = vld [vmem:[%s198 + $0x8c] sm:$0x1]
      %v275 = vld [vmem:[%s198 + $0x98] sm:$0x1]
      %v276 = vld [vmem:[%s198 + $0xa4] sm:$0x1]
      %v277 = vld [vmem:[%s198 + $0xb0] sm:$0x1]
      %v278 = vld [vmem:[%s198 + $0xbc] sm:$0x1]
      %v279 = vunpack.c.l.bf16 %v263
      %v280 = vunpack.c.l.bf16 %v264
      %v281 = vunpack.c.l.bf16 %v265
      %v282 = vunpack.c.l.bf16 %v266
      %v283 = vunpack.c.l.bf16 %v267
      %v284 = vunpack.c.l.bf16 %v268
      %v285 = vunpack.c.l.bf16 %v269
      %v286 = vunpack.c.l.bf16 %v270
      %v287 = vunpack.c.l.bf16 %v271
      %v288 = vunpack.c.l.bf16 %v272
      %v289 = vunpack.c.l.bf16 %v273
      %v290 = vunpack.c.l.bf16 %v274
      %v291 = vunpack.c.l.bf16 %v275
      %v292 = vunpack.c.l.bf16 %v276
      %v293 = vunpack.c.l.bf16 %v277
      %v294 = vunpack.c.l.bf16 %v278
      %vm343 = vcmask 1046528
      %v344 = vrot.slane %v231, 1
      %v345 = vrot.slane %v232, 1
      %v346 = vsel %vm343, %v344, %v345
      %v347 = vrot.slane %v279, 1
      %v348 = vsel %vm343, %v345, %v347
      %v349 = vrot.slane %v233, 1
      %v350 = vrot.slane %v234, 1
      %v351 = vsel %vm343, %v349, %v350
      %v352 = vrot.slane %v280, 1
      %v353 = vsel %vm343, %v350, %v352
      %v354 = vrot.slane %v235, 1
      %v355 = vrot.slane %v236, 1
      %v356 = vsel %vm343, %v354, %v355
      %v357 = vrot.slane %v281, 1
      %v358 = vsel %vm343, %v355, %v357
      %v359 = vrot.slane %v237, 1
      %v360 = vrot.slane %v238, 1
      %v361 = vsel %vm343, %v359, %v360
      %v362 = vrot.slane %v282, 1
      %v363 = vsel %vm343, %v360, %v362
      %v364 = vrot.slane %v239, 1
      %v365 = vrot.slane %v240, 1
      %v366 = vsel %vm343, %v364, %v365
      %v367 = vrot.slane %v283, 1
      %v368 = vsel %vm343, %v365, %v367
      %v369 = vrot.slane %v241, 1
      %v370 = vrot.slane %v242, 1
      %v371 = vsel %vm343, %v369, %v370
      %v372 = vrot.slane %v284, 1
      %v373 = vsel %vm343, %v370, %v372
      %v374 = vrot.slane %v243, 1
      %v375 = vrot.slane %v244, 1
      %v376 = vsel %vm343, %v374, %v375
      %v377 = vrot.slane %v285, 1
      %v378 = vsel %vm343, %v375, %v377
      %v379 = vrot.slane %v245, 1
      %v380 = vrot.slane %v246, 1
      %v381 = vsel %vm343, %v379, %v380
      %v382 = vrot.slane %v286, 1
      %v383 = vsel %vm343, %v380, %v382
      %v384 = vrot.slane %v247, 1
      %v385 = vrot.slane %v248, 1
      %v386 = vsel %vm343, %v384, %v385
      %v387 = vrot.slane %v287, 1
      %v388 = vsel %vm343, %v385, %v387
      %v389 = vrot.slane %v249, 1
      %v390 = vrot.slane %v250, 1
      %v391 = vsel %vm343, %v389, %v390
      %v392 = vrot.slane %v288, 1
      %v393 = vsel %vm343, %v390, %v392
      %v394 = vrot.slane %v251, 1
      %v395 = vrot.slane %v252, 1
      %v396 = vsel %vm343, %v394, %v395
      %v397 = vrot.slane %v289, 1
      %v398 = vsel %vm343, %v395, %v397
      %v399 = vrot.slane %v253, 1
      %v400 = vrot.slane %v254, 1
      %v401 = vsel %vm343, %v399, %v400
      %v402 = vrot.slane %v290, 1
      %v403 = vsel %vm343, %v400, %v402
      %v404 = vrot.slane %v255, 1
      %v405 = vrot.slane %v256, 1
      %v406 = vsel %vm343, %v404, %v405
      %v407 = vrot.slane %v291, 1
      %v408 = vsel %vm343, %v405, %v407
      %v409 = vrot.slane %v257, 1
      %v410 = vrot.slane %v258, 1
      %v411 = vsel %vm343, %v409, %v410
      %v412 = vrot.slane %v292, 1
      %v413 = vsel %vm343, %v410, %v412
      %v414 = vrot.slane %v259, 1
      %v415 = vrot.slane %v260, 1
      %v416 = vsel %vm343, %v414, %v415
      %v417 = vrot.slane %v293, 1
      %v418 = vsel %vm343, %v415, %v417
      %v419 = vrot.slane %v261, 1
      %v420 = vrot.slane %v262, 1
      %v421 = vsel %vm343, %v419, %v420
      %v422 = vrot.slane %v294, 1
      %v423 = vsel %vm343, %v420, %v422
      %v424 = vld [vmem:[%s198] sm:$0xe]
      %v425 = vld [vmem:[%s198 + $0xc] sm:$0xe]
      %v426 = vld [vmem:[%s198 + $0x18] sm:$0xe]
      %v427 = vld [vmem:[%s198 + $0x24] sm:$0xe]
      %v428 = vld [vmem:[%s198 + $0x30] sm:$0xe]
      %v429 = vld [vmem:[%s198 + $0x3c] sm:$0xe]
      %v430 = vld [vmem:[%s198 + $0x48] sm:$0xe]
      %v431 = vld [vmem:[%s198 + $0x54] sm:$0xe]
      %v432 = vld [vmem:[%s198 + $0x60] sm:$0xe]
      %v433 = vld [vmem:[%s198 + $0x6c] sm:$0xe]
      %v434 = vld [vmem:[%s198 + $0x78] sm:$0xe]
      %v435 = vld [vmem:[%s198 + $0x84] sm:$0xe]
      %v436 = vld [vmem:[%s198 + $0x90] sm:$0xe]
      %v437 = vld [vmem:[%s198 + $0x9c] sm:$0xe]
      %v438 = vld [vmem:[%s198 + $0xa8] sm:$0xe]
      %v439 = vld [vmem:[%s198 + $0xb4] sm:$0xe]
      %v440 = vunpack.c.l.bf16 %v424
      %v441 = vunpack.c.l.bf16 %v425
      %v442 = vunpack.c.l.bf16 %v426
      %v443 = vunpack.c.l.bf16 %v427
      %v444 = vunpack.c.l.bf16 %v428
      %v445 = vunpack.c.l.bf16 %v429
      %v446 = vunpack.c.l.bf16 %v430
      %v447 = vunpack.c.l.bf16 %v431
      %v448 = vunpack.c.l.bf16 %v432
      %v449 = vunpack.c.l.bf16 %v433
      %v450 = vunpack.c.l.bf16 %v434
      %v451 = vunpack.c.l.bf16 %v435
      %v452 = vunpack.c.l.bf16 %v436
      %v453 = vunpack.c.l.bf16 %v437
      %v454 = vunpack.c.l.bf16 %v438
      %v455 = vunpack.c.l.bf16 %v439
      %vm472 = vcmask 1045504
      %v473 = vrot.slane %v440, 2
      %v474 = vrot.slane %v232, 2
      %v475 = vsel %vm472, %v473, %v474
      %v476 = vrot.slane %v279, 2
      %v477 = vsel %vm472, %v474, %v476
      %v478 = vrot.slane %v441, 2
      %v479 = vrot.slane %v234, 2
      %v480 = vsel %vm472, %v478, %v479
      %v481 = vrot.slane %v280, 2
      %v482 = vsel %vm472, %v479, %v481
      %v483 = vrot.slane %v442, 2
      %v484 = vrot.slane %v236, 2
      %v485 = vsel %vm472, %v483, %v484
      %v486 = vrot.slane %v281, 2
      %v487 = vsel %vm472, %v484, %v486
      %v488 = vrot.slane %v443, 2
      %v489 = vrot.slane %v238, 2
      %v490 = vsel %vm472, %v488, %v489
      %v491 = vrot.slane %v282, 2
      %v492 = vsel %vm472, %v489, %v491
      %v493 = vrot.slane %v444, 2
      %v494 = vrot.slane %v240, 2
      %v495 = vsel %vm472, %v493, %v494
      %v496 = vrot.slane %v283, 2
      %v497 = vsel %vm472, %v494, %v496
      %v498 = vrot.slane %v445, 2
      %v499 = vrot.slane %v242, 2
      %v500 = vsel %vm472, %v498, %v499
      %v501 = vrot.slane %v284, 2
      %v502 = vsel %vm472, %v499, %v501
      %v503 = vrot.slane %v446, 2
      %v504 = vrot.slane %v244, 2
      %v505 = vsel %vm472, %v503, %v504
      %v506 = vrot.slane %v285, 2
      %v507 = vsel %vm472, %v504, %v506
      %v508 = vrot.slane %v447, 2
      %v509 = vrot.slane %v246, 2
      %v510 = vsel %vm472, %v508, %v509
      %v511 = vrot.slane %v286, 2
      %v512 = vsel %vm472, %v509, %v511
      %v513 = vrot.slane %v448, 2
      %v514 = vrot.slane %v248, 2
      %v515 = vsel %vm472, %v513, %v514
      %v516 = vrot.slane %v287, 2
      %v517 = vsel %vm472, %v514, %v516
      %v518 = vrot.slane %v449, 2
      %v519 = vrot.slane %v250, 2
      %v520 = vsel %vm472, %v518, %v519
      %v521 = vrot.slane %v288, 2
      %v522 = vsel %vm472, %v519, %v521
      %v523 = vrot.slane %v450, 2
      %v524 = vrot.slane %v252, 2
      %v525 = vsel %vm472, %v523, %v524
      %v526 = vrot.slane %v289, 2
      %v527 = vsel %vm472, %v524, %v526
      %v528 = vrot.slane %v451, 2
      %v529 = vrot.slane %v254, 2
      %v530 = vsel %vm472, %v528, %v529
      %v531 = vrot.slane %v290, 2
      %v532 = vsel %vm472, %v529, %v531
      %v533 = vrot.slane %v452, 2
      %v534 = vrot.slane %v256, 2
      %v535 = vsel %vm472, %v533, %v534
      %v536 = vrot.slane %v291, 2
      %v537 = vsel %vm472, %v534, %v536
      %v538 = vrot.slane %v453, 2
      %v539 = vrot.slane %v258, 2
      %v540 = vsel %vm472, %v538, %v539
      %v541 = vrot.slane %v292, 2
      %v542 = vsel %vm472, %v539, %v541
      %v543 = vrot.slane %v454, 2
      %v544 = vrot.slane %v260, 2
      %v545 = vsel %vm472, %v543, %v544
      %v546 = vrot.slane %v293, 2
      %v547 = vsel %vm472, %v544, %v546
      %v548 = vrot.slane %v455, 2
      %v549 = vrot.slane %v262, 2
      %v550 = vsel %vm472, %v548, %v549
      %v551 = vrot.slane %v294, 2
      %v552 = vsel %vm472, %v549, %v551
      %s553 = sadd.s32 %s195, 1
      %s554 = smul.u32 %s553, 3
      %s555 = smul.addr %s554, 4
      %s556 = scalar_lea.vmem %s183, %s555
      %v557 = vld [vmem:[%s556] sm:$0xf]
      %v558 = vld [vmem:[%s556 + $0x4] sm:$0xf]
      %v559 = vld [vmem:[%s556 + $0xc] sm:$0xf]
      %v560 = vld [vmem:[%s556 + $0x10] sm:$0xf]
      %v561 = vld [vmem:[%s556 + $0x18] sm:$0xf]
      %v562 = vld [vmem:[%s556 + $0x1c] sm:$0xf]
      %v563 = vld [vmem:[%s556 + $0x24] sm:$0xf]
      %v564 = vld [vmem:[%s556 + $0x28] sm:$0xf]
      %v565 = vld [vmem:[%s556 + $0x30] sm:$0xf]
      %v566 = vld [vmem:[%s556 + $0x34] sm:$0xf]
      %v567 = vld [vmem:[%s556 + $0x3c] sm:$0xf]
      %v568 = vld [vmem:[%s556 + $0x40] sm:$0xf]
      %v569 = vld [vmem:[%s556 + $0x48] sm:$0xf]
      %v570 = vld [vmem:[%s556 + $0x4c] sm:$0xf]
      %v571 = vld [vmem:[%s556 + $0x54] sm:$0xf]
      %v572 = vld [vmem:[%s556 + $0x58] sm:$0xf]
      %v573 = vld [vmem:[%s556 + $0x60] sm:$0xf]
      %v574 = vld [vmem:[%s556 + $0x64] sm:$0xf]
      %v575 = vld [vmem:[%s556 + $0x6c] sm:$0xf]
      %v576 = vld [vmem:[%s556 + $0x70] sm:$0xf]
      %v577 = vld [vmem:[%s556 + $0x78] sm:$0xf]
      %v578 = vld [vmem:[%s556 + $0x7c] sm:$0xf]
      %v579 = vld [vmem:[%s556 + $0x84] sm:$0xf]
      %v580 = vld [vmem:[%s556 + $0x88] sm:$0xf]
      %v581 = vld [vmem:[%s556 + $0x90] sm:$0xf]
      %v582 = vld [vmem:[%s556 + $0x94] sm:$0xf]
      %v583 = vld [vmem:[%s556 + $0x9c] sm:$0xf]
      %v584 = vld [vmem:[%s556 + $0xa0] sm:$0xf]
      %v585 = vld [vmem:[%s556 + $0xa8] sm:$0xf]
      %v586 = vld [vmem:[%s556 + $0xac] sm:$0xf]
      %v587 = vld [vmem:[%s556 + $0xb4] sm:$0xf]
      %v588 = vld [vmem:[%s556 + $0xb8] sm:$0xf]
      %v589 = vunpack.c.l.bf16 %v557
      %v590 = vunpack.c.l.bf16 %v558
      %v591 = vunpack.c.l.bf16 %v559
      %v592 = vunpack.c.l.bf16 %v560
      %v593 = vunpack.c.l.bf16 %v561
      %v594 = vunpack.c.l.bf16 %v562
      %v595 = vunpack.c.l.bf16 %v563
      %v596 = vunpack.c.l.bf16 %v564
      %v597 = vunpack.c.l.bf16 %v565
      %v598 = vunpack.c.l.bf16 %v566
      %v599 = vunpack.c.l.bf16 %v567
      %v600 = vunpack.c.l.bf16 %v568
      %v601 = vunpack.c.l.bf16 %v569
      %v602 = vunpack.c.l.bf16 %v570
      %v603 = vunpack.c.l.bf16 %v571
      %v604 = vunpack.c.l.bf16 %v572
      %v605 = vunpack.c.l.bf16 %v573
      %v606 = vunpack.c.l.bf16 %v574
      %v607 = vunpack.c.l.bf16 %v575
      %v608 = vunpack.c.l.bf16 %v576
      %v609 = vunpack.c.l.bf16 %v577
      %v610 = vunpack.c.l.bf16 %v578
      %v611 = vunpack.c.l.bf16 %v579
      %v612 = vunpack.c.l.bf16 %v580
      %v613 = vunpack.c.l.bf16 %v581
      %v614 = vunpack.c.l.bf16 %v582
      %v615 = vunpack.c.l.bf16 %v583
      %v616 = vunpack.c.l.bf16 %v584
      %v617 = vunpack.c.l.bf16 %v585
      %v618 = vunpack.c.l.bf16 %v586
      %v619 = vunpack.c.l.bf16 %v587
      %v620 = vunpack.c.l.bf16 %v588
      %v621 = vld [vmem:[%s556 + $0x8] sm:$0x1]
      %v622 = vld [vmem:[%s556 + $0x14] sm:$0x1]
      %v623 = vld [vmem:[%s556 + $0x20] sm:$0x1]
      %v624 = vld [vmem:[%s556 + $0x2c] sm:$0x1]
      %v625 = vld [vmem:[%s556 + $0x38] sm:$0x1]
      %v626 = vld [vmem:[%s556 + $0x44] sm:$0x1]
      %v627 = vld [vmem:[%s556 + $0x50] sm:$0x1]
      %v628 = vld [vmem:[%s556 + $0x5c] sm:$0x1]
      %v629 = vld [vmem:[%s556 + $0x68] sm:$0x1]
      %v630 = vld [vmem:[%s556 + $0x74] sm:$0x1]
      %v631 = vld [vmem:[%s556 + $0x80] sm:$0x1]
      %v632 = vld [vmem:[%s556 + $0x8c] sm:$0x1]
      %v633 = vld [vmem:[%s556 + $0x98] sm:$0x1]
      %v634 = vld [vmem:[%s556 + $0xa4] sm:$0x1]
      %v635 = vld [vmem:[%s556 + $0xb0] sm:$0x1]
      %v636 = vld [vmem:[%s556 + $0xbc] sm:$0x1]
      %v637 = vunpack.c.l.bf16 %v621
      %v638 = vunpack.c.l.bf16 %v622
      %v639 = vunpack.c.l.bf16 %v623
      %v640 = vunpack.c.l.bf16 %v624
      %v641 = vunpack.c.l.bf16 %v625
      %v642 = vunpack.c.l.bf16 %v626
      %v643 = vunpack.c.l.bf16 %v627
      %v644 = vunpack.c.l.bf16 %v628
      %v645 = vunpack.c.l.bf16 %v629
      %v646 = vunpack.c.l.bf16 %v630
      %v647 = vunpack.c.l.bf16 %v631
      %v648 = vunpack.c.l.bf16 %v632
      %v649 = vunpack.c.l.bf16 %v633
      %v650 = vunpack.c.l.bf16 %v634
      %v651 = vunpack.c.l.bf16 %v635
      %v652 = vunpack.c.l.bf16 %v636
      %v701 = vrot.slane %v589, 1
      %v702 = vrot.slane %v590, 1
      %v703 = vsel %vm343, %v701, %v702
      %v704 = vrot.slane %v637, 1
      %v705 = vsel %vm343, %v702, %v704
      %v706 = vrot.slane %v591, 1
      %v707 = vrot.slane %v592, 1
      %v708 = vsel %vm343, %v706, %v707
      %v709 = vrot.slane %v638, 1
      %v710 = vsel %vm343, %v707, %v709
      %v711 = vrot.slane %v593, 1
      %v712 = vrot.slane %v594, 1
      %v713 = vsel %vm343, %v711, %v712
      %v714 = vrot.slane %v639, 1
      %v715 = vsel %vm343, %v712, %v714
      %v716 = vrot.slane %v595, 1
      %v717 = vrot.slane %v596, 1
      %v718 = vsel %vm343, %v716, %v717
      %v719 = vrot.slane %v640, 1
      %v720 = vsel %vm343, %v717, %v719
      %v721 = vrot.slane %v597, 1
      %v722 = vrot.slane %v598, 1
      %v723 = vsel %vm343, %v721, %v722
      %v724 = vrot.slane %v641, 1
      %v725 = vsel %vm343, %v722, %v724
      %v726 = vrot.slane %v599, 1
      %v727 = vrot.slane %v600, 1
      %v728 = vsel %vm343, %v726, %v727
      %v729 = vrot.slane %v642, 1
      %v730 = vsel %vm343, %v727, %v729
      %v731 = vrot.slane %v601, 1
      %v732 = vrot.slane %v602, 1
      %v733 = vsel %vm343, %v731, %v732
      %v734 = vrot.slane %v643, 1
      %v735 = vsel %vm343, %v732, %v734
      %v736 = vrot.slane %v603, 1
      %v737 = vrot.slane %v604, 1
      %v738 = vsel %vm343, %v736, %v737
      %v739 = vrot.slane %v644, 1
      %v740 = vsel %vm343, %v737, %v739
      %v741 = vrot.slane %v605, 1
      %v742 = vrot.slane %v606, 1
      %v743 = vsel %vm343, %v741, %v742
      %v744 = vrot.slane %v645, 1
      %v745 = vsel %vm343, %v742, %v744
      %v746 = vrot.slane %v607, 1
      %v747 = vrot.slane %v608, 1
      %v748 = vsel %vm343, %v746, %v747
      %v749 = vrot.slane %v646, 1
      %v750 = vsel %vm343, %v747, %v749
      %v751 = vrot.slane %v609, 1
      %v752 = vrot.slane %v610, 1
      %v753 = vsel %vm343, %v751, %v752
      %v754 = vrot.slane %v647, 1
      %v755 = vsel %vm343, %v752, %v754
      %v756 = vrot.slane %v611, 1
      %v757 = vrot.slane %v612, 1
      %v758 = vsel %vm343, %v756, %v757
      %v759 = vrot.slane %v648, 1
      %v760 = vsel %vm343, %v757, %v759
      %v761 = vrot.slane %v613, 1
      %v762 = vrot.slane %v614, 1
      %v763 = vsel %vm343, %v761, %v762
      %v764 = vrot.slane %v649, 1
      %v765 = vsel %vm343, %v762, %v764
      %v766 = vrot.slane %v615, 1
      %v767 = vrot.slane %v616, 1
      %v768 = vsel %vm343, %v766, %v767
      %v769 = vrot.slane %v650, 1
      %v770 = vsel %vm343, %v767, %v769
      %v771 = vrot.slane %v617, 1
      %v772 = vrot.slane %v618, 1
      %v773 = vsel %vm343, %v771, %v772
      %v774 = vrot.slane %v651, 1
      %v775 = vsel %vm343, %v772, %v774
      %v776 = vrot.slane %v619, 1
      %v777 = vrot.slane %v620, 1
      %v778 = vsel %vm343, %v776, %v777
      %v779 = vrot.slane %v652, 1
      %v780 = vsel %vm343, %v777, %v779
      %v781 = vld [vmem:[%s556] sm:$0xe]
      %v782 = vld [vmem:[%s556 + $0xc] sm:$0xe]
      %v783 = vld [vmem:[%s556 + $0x18] sm:$0xe]
      %v784 = vld [vmem:[%s556 + $0x24] sm:$0xe]
      %v785 = vld [vmem:[%s556 + $0x30] sm:$0xe]
      %v786 = vld [vmem:[%s556 + $0x3c] sm:$0xe]
      %v787 = vld [vmem:[%s556 + $0x48] sm:$0xe]
      %v788 = vld [vmem:[%s556 + $0x54] sm:$0xe]
      %v789 = vld [vmem:[%s556 + $0x60] sm:$0xe]
      %v790 = vld [vmem:[%s556 + $0x6c] sm:$0xe]
      %v791 = vld [vmem:[%s556 + $0x78] sm:$0xe]
      %v792 = vld [vmem:[%s556 + $0x84] sm:$0xe]
      %v793 = vld [vmem:[%s556 + $0x90] sm:$0xe]
      %v794 = vld [vmem:[%s556 + $0x9c] sm:$0xe]
      %v795 = vld [vmem:[%s556 + $0xa8] sm:$0xe]
      %v796 = vld [vmem:[%s556 + $0xb4] sm:$0xe]
      %v797 = vunpack.c.l.bf16 %v781
      %v798 = vunpack.c.l.bf16 %v782
      %v799 = vunpack.c.l.bf16 %v783
      %v800 = vunpack.c.l.bf16 %v784
      %v801 = vunpack.c.l.bf16 %v785
      %v802 = vunpack.c.l.bf16 %v786
      %v803 = vunpack.c.l.bf16 %v787
      %v804 = vunpack.c.l.bf16 %v788
      %v805 = vunpack.c.l.bf16 %v789
      %v806 = vunpack.c.l.bf16 %v790
      %v807 = vunpack.c.l.bf16 %v791
      %v808 = vunpack.c.l.bf16 %v792
      %v809 = vunpack.c.l.bf16 %v793
      %v810 = vunpack.c.l.bf16 %v794
      %v811 = vunpack.c.l.bf16 %v795
      %v812 = vunpack.c.l.bf16 %v796
      %v829 = vrot.slane %v797, 2
      %v830 = vrot.slane %v590, 2
      %v831 = vsel %vm472, %v829, %v830
      %v832 = vrot.slane %v637, 2
      %v833 = vsel %vm472, %v830, %v832
      %v834 = vrot.slane %v798, 2
      %v835 = vrot.slane %v592, 2
      %v836 = vsel %vm472, %v834, %v835
      %v837 = vrot.slane %v638, 2
      %v838 = vsel %vm472, %v835, %v837
      %v839 = vrot.slane %v799, 2
      %v840 = vrot.slane %v594, 2
      %v841 = vsel %vm472, %v839, %v840
      %v842 = vrot.slane %v639, 2
      %v843 = vsel %vm472, %v840, %v842
      %v844 = vrot.slane %v800, 2
      %v845 = vrot.slane %v596, 2
      %v846 = vsel %vm472, %v844, %v845
      %v847 = vrot.slane %v640, 2
      %v848 = vsel %vm472, %v845, %v847
      %v849 = vrot.slane %v801, 2
      %v850 = vrot.slane %v598, 2
      %v851 = vsel %vm472, %v849, %v850
      %v852 = vrot.slane %v641, 2
      %v853 = vsel %vm472, %v850, %v852
      %v854 = vrot.slane %v802, 2
      %v855 = vrot.slane %v600, 2
      %v856 = vsel %vm472, %v854, %v855
      %v857 = vrot.slane %v642, 2
      %v858 = vsel %vm472, %v855, %v857
      %v859 = vrot.slane %v803, 2
      %v860 = vrot.slane %v602, 2
      %v861 = vsel %vm472, %v859, %v860
      %v862 = vrot.slane %v643, 2
      %v863 = vsel %vm472, %v860, %v862
      %v864 = vrot.slane %v804, 2
      %v865 = vrot.slane %v604, 2
      %v866 = vsel %vm472, %v864, %v865
      %v867 = vrot.slane %v644, 2
      %v868 = vsel %vm472, %v865, %v867
      %v869 = vrot.slane %v805, 2
      %v870 = vrot.slane %v606, 2
      %v871 = vsel %vm472, %v869, %v870
      %v872 = vrot.slane %v645, 2
      %v873 = vsel %vm472, %v870, %v872
      %v874 = vrot.slane %v806, 2
      %v875 = vrot.slane %v608, 2
      %v876 = vsel %vm472, %v874, %v875
      %v877 = vrot.slane %v646, 2
      %v878 = vsel %vm472, %v875, %v877
      %v879 = vrot.slane %v807, 2
      %v880 = vrot.slane %v610, 2
      %v881 = vsel %vm472, %v879, %v880
      %v882 = vrot.slane %v647, 2
      %v883 = vsel %vm472, %v880, %v882
      %v884 = vrot.slane %v808, 2
      %v885 = vrot.slane %v612, 2
      %v886 = vsel %vm472, %v884, %v885
      %v887 = vrot.slane %v648, 2
      %v888 = vsel %vm472, %v885, %v887
      %v889 = vrot.slane %v809, 2
      %v890 = vrot.slane %v614, 2
      %v891 = vsel %vm472, %v889, %v890
      %v892 = vrot.slane %v649, 2
      %v893 = vsel %vm472, %v890, %v892
      %v894 = vrot.slane %v810, 2
      %v895 = vrot.slane %v616, 2
      %v896 = vsel %vm472, %v894, %v895
      %v897 = vrot.slane %v650, 2
      %v898 = vsel %vm472, %v895, %v897
      %v899 = vrot.slane %v811, 2
      %v900 = vrot.slane %v618, 2
      %v901 = vsel %vm472, %v899, %v900
      %v902 = vrot.slane %v651, 2
      %v903 = vsel %vm472, %v900, %v902
      %v904 = vrot.slane %v812, 2
      %v905 = vrot.slane %v620, 2
      %v906 = vsel %vm472, %v904, %v905
      %v907 = vrot.slane %v652, 2
      %v908 = vsel %vm472, %v905, %v907
      %s909 = sadd.s32 %s195, 2
      %s910 = smul.u32 %s909, 3
      %s911 = smul.addr %s910, 4
      %s912 = scalar_lea.vmem %s183, %s911
      %v913 = vld [vmem:[%s912] sm:$0xf]
      %v914 = vld [vmem:[%s912 + $0x4] sm:$0xf]
      %v915 = vld [vmem:[%s912 + $0xc] sm:$0xf]
      %v916 = vld [vmem:[%s912 + $0x10] sm:$0xf]
      %v917 = vld [vmem:[%s912 + $0x18] sm:$0xf]
      %v918 = vld [vmem:[%s912 + $0x1c] sm:$0xf]
      %v919 = vld [vmem:[%s912 + $0x24] sm:$0xf]
      %v920 = vld [vmem:[%s912 + $0x28] sm:$0xf]
      %v921 = vld [vmem:[%s912 + $0x30] sm:$0xf]
      %v922 = vld [vmem:[%s912 + $0x34] sm:$0xf]
      %v923 = vld [vmem:[%s912 + $0x3c] sm:$0xf]
      %v924 = vld [vmem:[%s912 + $0x40] sm:$0xf]
      %v925 = vld [vmem:[%s912 + $0x48] sm:$0xf]
      %v926 = vld [vmem:[%s912 + $0x4c] sm:$0xf]
      %v927 = vld [vmem:[%s912 + $0x54] sm:$0xf]
      %v928 = vld [vmem:[%s912 + $0x58] sm:$0xf]
      %v929 = vld [vmem:[%s912 + $0x60] sm:$0xf]
      %v930 = vld [vmem:[%s912 + $0x64] sm:$0xf]
      %v931 = vld [vmem:[%s912 + $0x6c] sm:$0xf]
      %v932 = vld [vmem:[%s912 + $0x70] sm:$0xf]
      %v933 = vld [vmem:[%s912 + $0x78] sm:$0xf]
      %v934 = vld [vmem:[%s912 + $0x7c] sm:$0xf]
      %v935 = vld [vmem:[%s912 + $0x84] sm:$0xf]
      %v936 = vld [vmem:[%s912 + $0x88] sm:$0xf]
      %v937 = vld [vmem:[%s912 + $0x90] sm:$0xf]
      %v938 = vld [vmem:[%s912 + $0x94] sm:$0xf]
      %v939 = vld [vmem:[%s912 + $0x9c] sm:$0xf]
      %v940 = vld [vmem:[%s912 + $0xa0] sm:$0xf]
      %v941 = vld [vmem:[%s912 + $0xa8] sm:$0xf]
      %v942 = vld [vmem:[%s912 + $0xac] sm:$0xf]
      %v943 = vld [vmem:[%s912 + $0xb4] sm:$0xf]
      %v944 = vld [vmem:[%s912 + $0xb8] sm:$0xf]
      %v945 = vunpack.c.l.bf16 %v913
      %v946 = vunpack.c.l.bf16 %v914
      %v947 = vunpack.c.l.bf16 %v915
      %v948 = vunpack.c.l.bf16 %v916
      %v949 = vunpack.c.l.bf16 %v917
      %v950 = vunpack.c.l.bf16 %v918
      %v951 = vunpack.c.l.bf16 %v919
      %v952 = vunpack.c.l.bf16 %v920
      %v953 = vunpack.c.l.bf16 %v921
      %v954 = vunpack.c.l.bf16 %v922
      %v955 = vunpack.c.l.bf16 %v923
      %v956 = vunpack.c.l.bf16 %v924
      %v957 = vunpack.c.l.bf16 %v925
      %v958 = vunpack.c.l.bf16 %v926
      %v959 = vunpack.c.l.bf16 %v927
      %v960 = vunpack.c.l.bf16 %v928
      %v961 = vunpack.c.l.bf16 %v929
      %v962 = vunpack.c.l.bf16 %v930
      %v963 = vunpack.c.l.bf16 %v931
      %v964 = vunpack.c.l.bf16 %v932
      %v965 = vunpack.c.l.bf16 %v933
      %v966 = vunpack.c.l.bf16 %v934
      %v967 = vunpack.c.l.bf16 %v935
      %v968 = vunpack.c.l.bf16 %v936
      %v969 = vunpack.c.l.bf16 %v937
      %v970 = vunpack.c.l.bf16 %v938
      %v971 = vunpack.c.l.bf16 %v939
      %v972 = vunpack.c.l.bf16 %v940
      %v973 = vunpack.c.l.bf16 %v941
      %v974 = vunpack.c.l.bf16 %v942
      %v975 = vunpack.c.l.bf16 %v943
      %v976 = vunpack.c.l.bf16 %v944
      %v977 = vld [vmem:[%s912 + $0x8] sm:$0x1]
      %v978 = vld [vmem:[%s912 + $0x14] sm:$0x1]
      %v979 = vld [vmem:[%s912 + $0x20] sm:$0x1]
      %v980 = vld [vmem:[%s912 + $0x2c] sm:$0x1]
      %v981 = vld [vmem:[%s912 + $0x38] sm:$0x1]
      %v982 = vld [vmem:[%s912 + $0x44] sm:$0x1]
      %v983 = vld [vmem:[%s912 + $0x50] sm:$0x1]
      %v984 = vld [vmem:[%s912 + $0x5c] sm:$0x1]
      %v985 = vld [vmem:[%s912 + $0x68] sm:$0x1]
      %v986 = vld [vmem:[%s912 + $0x74] sm:$0x1]
      %v987 = vld [vmem:[%s912 + $0x80] sm:$0x1]
      %v988 = vld [vmem:[%s912 + $0x8c] sm:$0x1]
      %v989 = vld [vmem:[%s912 + $0x98] sm:$0x1]
      %v990 = vld [vmem:[%s912 + $0xa4] sm:$0x1]
      %v991 = vld [vmem:[%s912 + $0xb0] sm:$0x1]
      %v992 = vld [vmem:[%s912 + $0xbc] sm:$0x1]
      %v993 = vunpack.c.l.bf16 %v977
      %v994 = vunpack.c.l.bf16 %v978
      %v995 = vunpack.c.l.bf16 %v979
      %v996 = vunpack.c.l.bf16 %v980
      %v997 = vunpack.c.l.bf16 %v981
      %v998 = vunpack.c.l.bf16 %v982
      %v999 = vunpack.c.l.bf16 %v983
      %v1000 = vunpack.c.l.bf16 %v984
      %v1001 = vunpack.c.l.bf16 %v985
      %v1002 = vunpack.c.l.bf16 %v986
      %v1003 = vunpack.c.l.bf16 %v987
      %v1004 = vunpack.c.l.bf16 %v988
      %v1005 = vunpack.c.l.bf16 %v989
      %v1006 = vunpack.c.l.bf16 %v990
      %v1007 = vunpack.c.l.bf16 %v991
      %v1008 = vunpack.c.l.bf16 %v992
      %v1057 = vrot.slane %v945, 1
      %v1058 = vrot.slane %v946, 1
      %v1059 = vsel %vm343, %v1057, %v1058
      %v1060 = vrot.slane %v993, 1
      %v1061 = vsel %vm343, %v1058, %v1060
      %v1062 = vrot.slane %v947, 1
      %v1063 = vrot.slane %v948, 1
      %v1064 = vsel %vm343, %v1062, %v1063
      %v1065 = vrot.slane %v994, 1
      %v1066 = vsel %vm343, %v1063, %v1065
      %v1067 = vrot.slane %v949, 1
      %v1068 = vrot.slane %v950, 1
      %v1069 = vsel %vm343, %v1067, %v1068
      %v1070 = vrot.slane %v995, 1
      %v1071 = vsel %vm343, %v1068, %v1070
      %v1072 = vrot.slane %v951, 1
      %v1073 = vrot.slane %v952, 1
      %v1074 = vsel %vm343, %v1072, %v1073
      %v1075 = vrot.slane %v996, 1
      %v1076 = vsel %vm343, %v1073, %v1075
      %v1077 = vrot.slane %v953, 1
      %v1078 = vrot.slane %v954, 1
      %v1079 = vsel %vm343, %v1077, %v1078
      %v1080 = vrot.slane %v997, 1
      %v1081 = vsel %vm343, %v1078, %v1080
      %v1082 = vrot.slane %v955, 1
      %v1083 = vrot.slane %v956, 1
      %v1084 = vsel %vm343, %v1082, %v1083
      %v1085 = vrot.slane %v998, 1
      %v1086 = vsel %vm343, %v1083, %v1085
      %v1087 = vrot.slane %v957, 1
      %v1088 = vrot.slane %v958, 1
      %v1089 = vsel %vm343, %v1087, %v1088
      %v1090 = vrot.slane %v999, 1
      %v1091 = vsel %vm343, %v1088, %v1090
      %v1092 = vrot.slane %v959, 1
      %v1093 = vrot.slane %v960, 1
      %v1094 = vsel %vm343, %v1092, %v1093
      %v1095 = vrot.slane %v1000, 1
      %v1096 = vsel %vm343, %v1093, %v1095
      %v1097 = vrot.slane %v961, 1
      %v1098 = vrot.slane %v962, 1
      %v1099 = vsel %vm343, %v1097, %v1098
      %v1100 = vrot.slane %v1001, 1
      %v1101 = vsel %vm343, %v1098, %v1100
      %v1102 = vrot.slane %v963, 1
      %v1103 = vrot.slane %v964, 1
      %v1104 = vsel %vm343, %v1102, %v1103
      %v1105 = vrot.slane %v1002, 1
      %v1106 = vsel %vm343, %v1103, %v1105
      %v1107 = vrot.slane %v965, 1
      %v1108 = vrot.slane %v966, 1
      %v1109 = vsel %vm343, %v1107, %v1108
      %v1110 = vrot.slane %v1003, 1
      %v1111 = vsel %vm343, %v1108, %v1110
      %v1112 = vrot.slane %v967, 1
      %v1113 = vrot.slane %v968, 1
      %v1114 = vsel %vm343, %v1112, %v1113
      %v1115 = vrot.slane %v1004, 1
      %v1116 = vsel %vm343, %v1113, %v1115
      %v1117 = vrot.slane %v969, 1
      %v1118 = vrot.slane %v970, 1
      %v1119 = vsel %vm343, %v1117, %v1118
      %v1120 = vrot.slane %v1005, 1
      %v1121 = vsel %vm343, %v1118, %v1120
      %v1122 = vrot.slane %v971, 1
      %v1123 = vrot.slane %v972, 1
      %v1124 = vsel %vm343, %v1122, %v1123
      %v1125 = vrot.slane %v1006, 1
      %v1126 = vsel %vm343, %v1123, %v1125
      %v1127 = vrot.slane %v973, 1
      %v1128 = vrot.slane %v974, 1
      %v1129 = vsel %vm343, %v1127, %v1128
      %v1130 = vrot.slane %v1007, 1
      %v1131 = vsel %vm343, %v1128, %v1130
      %v1132 = vrot.slane %v975, 1
      %v1133 = vrot.slane %v976, 1
      %v1134 = vsel %vm343, %v1132, %v1133
      %v1135 = vrot.slane %v1008, 1
      %v1136 = vsel %vm343, %v1133, %v1135
      %v1137 = vld [vmem:[%s912] sm:$0xe]
      %v1138 = vld [vmem:[%s912 + $0xc] sm:$0xe]
      %v1139 = vld [vmem:[%s912 + $0x18] sm:$0xe]
      %v1140 = vld [vmem:[%s912 + $0x24] sm:$0xe]
      %v1141 = vld [vmem:[%s912 + $0x30] sm:$0xe]
      %v1142 = vld [vmem:[%s912 + $0x3c] sm:$0xe]
      %v1143 = vld [vmem:[%s912 + $0x48] sm:$0xe]
      %v1144 = vld [vmem:[%s912 + $0x54] sm:$0xe]
      %v1145 = vld [vmem:[%s912 + $0x60] sm:$0xe]
      %v1146 = vld [vmem:[%s912 + $0x6c] sm:$0xe]
      %v1147 = vld [vmem:[%s912 + $0x78] sm:$0xe]
      %v1148 = vld [vmem:[%s912 + $0x84] sm:$0xe]
      %v1149 = vld [vmem:[%s912 + $0x90] sm:$0xe]
      %v1150 = vld [vmem:[%s912 + $0x9c] sm:$0xe]
      %v1151 = vld [vmem:[%s912 + $0xa8] sm:$0xe]
      %v1152 = vld [vmem:[%s912 + $0xb4] sm:$0xe]
      %v1153 = vunpack.c.l.bf16 %v1137
      %v1154 = vunpack.c.l.bf16 %v1138
      %v1155 = vunpack.c.l.bf16 %v1139
      %v1156 = vunpack.c.l.bf16 %v1140
      %v1157 = vunpack.c.l.bf16 %v1141
      %v1158 = vunpack.c.l.bf16 %v1142
      %v1159 = vunpack.c.l.bf16 %v1143
      %v1160 = vunpack.c.l.bf16 %v1144
      %v1161 = vunpack.c.l.bf16 %v1145
      %v1162 = vunpack.c.l.bf16 %v1146
      %v1163 = vunpack.c.l.bf16 %v1147
      %v1164 = vunpack.c.l.bf16 %v1148
      %v1165 = vunpack.c.l.bf16 %v1149
      %v1166 = vunpack.c.l.bf16 %v1150
      %v1167 = vunpack.c.l.bf16 %v1151
      %v1168 = vunpack.c.l.bf16 %v1152
      %v1185 = vrot.slane %v1153, 2
      %v1186 = vrot.slane %v946, 2
      %v1187 = vsel %vm472, %v1185, %v1186
      %v1188 = vrot.slane %v993, 2
      %v1189 = vsel %vm472, %v1186, %v1188
      %v1190 = vrot.slane %v1154, 2
      %v1191 = vrot.slane %v948, 2
      %v1192 = vsel %vm472, %v1190, %v1191
      %v1193 = vrot.slane %v994, 2
      %v1194 = vsel %vm472, %v1191, %v1193
      %v1195 = vrot.slane %v1155, 2
      %v1196 = vrot.slane %v950, 2
      %v1197 = vsel %vm472, %v1195, %v1196
      %v1198 = vrot.slane %v995, 2
      %v1199 = vsel %vm472, %v1196, %v1198
      %v1200 = vrot.slane %v1156, 2
      %v1201 = vrot.slane %v952, 2
      %v1202 = vsel %vm472, %v1200, %v1201
      %v1203 = vrot.slane %v996, 2
      %v1204 = vsel %vm472, %v1201, %v1203
      %v1205 = vrot.slane %v1157, 2
      %v1206 = vrot.slane %v954, 2
      %v1207 = vsel %vm472, %v1205, %v1206
      %v1208 = vrot.slane %v997, 2
      %v1209 = vsel %vm472, %v1206, %v1208
      %v1210 = vrot.slane %v1158, 2
      %v1211 = vrot.slane %v956, 2
      %v1212 = vsel %vm472, %v1210, %v1211
      %v1213 = vrot.slane %v998, 2
      %v1214 = vsel %vm472, %v1211, %v1213
      %v1215 = vrot.slane %v1159, 2
      %v1216 = vrot.slane %v958, 2
      %v1217 = vsel %vm472, %v1215, %v1216
      %v1218 = vrot.slane %v999, 2
      %v1219 = vsel %vm472, %v1216, %v1218
      %v1220 = vrot.slane %v1160, 2
      %v1221 = vrot.slane %v960, 2
      %v1222 = vsel %vm472, %v1220, %v1221
      %v1223 = vrot.slane %v1000, 2
      %v1224 = vsel %vm472, %v1221, %v1223
      %v1225 = vrot.slane %v1161, 2
      %v1226 = vrot.slane %v962, 2
      %v1227 = vsel %vm472, %v1225, %v1226
      %v1228 = vrot.slane %v1001, 2
      %v1229 = vsel %vm472, %v1226, %v1228
      %v1230 = vrot.slane %v1162, 2
      %v1231 = vrot.slane %v964, 2
      %v1232 = vsel %vm472, %v1230, %v1231
      %v1233 = vrot.slane %v1002, 2
      %v1234 = vsel %vm472, %v1231, %v1233
      %v1235 = vrot.slane %v1163, 2
      %v1236 = vrot.slane %v966, 2
      %v1237 = vsel %vm472, %v1235, %v1236
      %v1238 = vrot.slane %v1003, 2
      %v1239 = vsel %vm472, %v1236, %v1238
      %v1240 = vrot.slane %v1164, 2
      %v1241 = vrot.slane %v968, 2
      %v1242 = vsel %vm472, %v1240, %v1241
      %v1243 = vrot.slane %v1004, 2
      %v1244 = vsel %vm472, %v1241, %v1243
      %v1245 = vrot.slane %v1165, 2
      %v1246 = vrot.slane %v970, 2
      %v1247 = vsel %vm472, %v1245, %v1246
      %v1248 = vrot.slane %v1005, 2
      %v1249 = vsel %vm472, %v1246, %v1248
      %v1250 = vrot.slane %v1166, 2
      %v1251 = vrot.slane %v972, 2
      %v1252 = vsel %vm472, %v1250, %v1251
      %v1253 = vrot.slane %v1006, 2
      %v1254 = vsel %vm472, %v1251, %v1253
      %v1255 = vrot.slane %v1167, 2
      %v1256 = vrot.slane %v974, 2
      %v1257 = vsel %vm472, %v1255, %v1256
      %v1258 = vrot.slane %v1007, 2
      %v1259 = vsel %vm472, %v1256, %v1258
      %v1260 = vrot.slane %v1168, 2
      %v1261 = vrot.slane %v976, 2
      %v1262 = vsel %vm472, %v1260, %v1261
      %v1263 = vrot.slane %v1008, 2
      %v1264 = vsel %vm472, %v1261, %v1263
      %1265 = vrot.lane.b32.xlu0 %v346, 3
      %v1266 = vpop.permute.xlu0 %1265
      %1267 = vrot.lane.b32.xlu0 %v348, 3
      %v1268 = vpop.permute.xlu0 %1267
      %1269 = vrot.lane.b32.xlu0 %v351, 3
      %v1270 = vpop.permute.xlu0 %1269
      %1271 = vrot.lane.b32.xlu0 %v353, 3
      %v1272 = vpop.permute.xlu0 %1271
      %1273 = vrot.lane.b32.xlu0 %v356, 3
      %v1274 = vpop.permute.xlu0 %1273
      %1275 = vrot.lane.b32.xlu0 %v358, 3
      %v1276 = vpop.permute.xlu0 %1275
      %1277 = vrot.lane.b32.xlu0 %v361, 3
      %v1278 = vpop.permute.xlu0 %1277
      %1279 = vrot.lane.b32.xlu0 %v363, 3
      %v1280 = vpop.permute.xlu0 %1279
      %1281 = vrot.lane.b32.xlu0 %v366, 3
      %v1282 = vpop.permute.xlu0 %1281
      %1283 = vrot.lane.b32.xlu0 %v368, 3
      %v1284 = vpop.permute.xlu0 %1283
      %1285 = vrot.lane.b32.xlu0 %v371, 3
      %v1286 = vpop.permute.xlu0 %1285
      %1287 = vrot.lane.b32.xlu0 %v373, 3
      %v1288 = vpop.permute.xlu0 %1287
      %1289 = vrot.lane.b32.xlu0 %v376, 3
      %v1290 = vpop.permute.xlu0 %1289
      %1291 = vrot.lane.b32.xlu0 %v378, 3
      %v1292 = vpop.permute.xlu0 %1291
      %1293 = vrot.lane.b32.xlu0 %v381, 3
      %v1294 = vpop.permute.xlu0 %1293
      %1295 = vrot.lane.b32.xlu0 %v383, 3
      %v1296 = vpop.permute.xlu0 %1295
      %1297 = vrot.lane.b32.xlu0 %v386, 3
      %v1298 = vpop.permute.xlu0 %1297
      %1299 = vrot.lane.b32.xlu0 %v388, 3
      %v1300 = vpop.permute.xlu0 %1299
      %1301 = vrot.lane.b32.xlu0 %v391, 3
      %v1302 = vpop.permute.xlu0 %1301
      %1303 = vrot.lane.b32.xlu0 %v393, 3
      %v1304 = vpop.permute.xlu0 %1303
      %1305 = vrot.lane.b32.xlu0 %v396, 3
      %v1306 = vpop.permute.xlu0 %1305
      %1307 = vrot.lane.b32.xlu0 %v398, 3
      %v1308 = vpop.permute.xlu0 %1307
      %1309 = vrot.lane.b32.xlu0 %v401, 3
      %v1310 = vpop.permute.xlu0 %1309
      %1311 = vrot.lane.b32.xlu0 %v403, 3
      %v1312 = vpop.permute.xlu0 %1311
      %1313 = vrot.lane.b32.xlu0 %v406, 3
      %v1314 = vpop.permute.xlu0 %1313
      %1315 = vrot.lane.b32.xlu0 %v408, 3
      %v1316 = vpop.permute.xlu0 %1315
      %1317 = vrot.lane.b32.xlu0 %v411, 3
      %v1318 = vpop.permute.xlu0 %1317
      %1319 = vrot.lane.b32.xlu0 %v413, 3
      %v1320 = vpop.permute.xlu0 %1319
      %1321 = vrot.lane.b32.xlu0 %v416, 3
      %v1322 = vpop.permute.xlu0 %1321
      %1323 = vrot.lane.b32.xlu0 %v418, 3
      %v1324 = vpop.permute.xlu0 %1323
      %1325 = vrot.lane.b32.xlu0 %v421, 3
      %v1326 = vpop.permute.xlu0 %1325
      %1327 = vrot.lane.b32.xlu0 %v423, 3
      %v1328 = vpop.permute.xlu0 %1327
      %1361 = vrot.lane.b32.xlu0 %v475, 6
      %v1362 = vpop.permute.xlu0 %1361
      %1363 = vrot.lane.b32.xlu0 %v477, 6
      %v1364 = vpop.permute.xlu0 %1363
      %1365 = vrot.lane.b32.xlu0 %v480, 6
      %v1366 = vpop.permute.xlu0 %1365
      %1367 = vrot.lane.b32.xlu0 %v482, 6
      %v1368 = vpop.permute.xlu0 %1367
      %1369 = vrot.lane.b32.xlu0 %v485, 6
      %v1370 = vpop.permute.xlu0 %1369
      %1371 = vrot.lane.b32.xlu0 %v487, 6
      %v1372 = vpop.permute.xlu0 %1371
      %1373 = vrot.lane.b32.xlu0 %v490, 6
      %v1374 = vpop.permute.xlu0 %1373
      %1375 = vrot.lane.b32.xlu0 %v492, 6
      %v1376 = vpop.permute.xlu0 %1375
      %1377 = vrot.lane.b32.xlu0 %v495, 6
      %v1378 = vpop.permute.xlu0 %1377
      %1379 = vrot.lane.b32.xlu0 %v497, 6
      %v1380 = vpop.permute.xlu0 %1379
      %1381 = vrot.lane.b32.xlu0 %v500, 6
      %v1382 = vpop.permute.xlu0 %1381
      %1383 = vrot.lane.b32.xlu0 %v502, 6
      %v1384 = vpop.permute.xlu0 %1383
      %1385 = vrot.lane.b32.xlu0 %v505, 6
      %v1386 = vpop.permute.xlu0 %1385
      %1387 = vrot.lane.b32.xlu0 %v507, 6
      %v1388 = vpop.permute.xlu0 %1387
      %1389 = vrot.lane.b32.xlu0 %v510, 6
      %v1390 = vpop.permute.xlu0 %1389
      %1391 = vrot.lane.b32.xlu0 %v512, 6
      %v1392 = vpop.permute.xlu0 %1391
      %1393 = vrot.lane.b32.xlu0 %v515, 6
      %v1394 = vpop.permute.xlu0 %1393
      %1395 = vrot.lane.b32.xlu0 %v517, 6
      %v1396 = vpop.permute.xlu0 %1395
      %1397 = vrot.lane.b32.xlu0 %v520, 6
      %v1398 = vpop.permute.xlu0 %1397
      %1399 = vrot.lane.b32.xlu0 %v522, 6
      %v1400 = vpop.permute.xlu0 %1399
      %1401 = vrot.lane.b32.xlu0 %v525, 6
      %v1402 = vpop.permute.xlu0 %1401
      %1403 = vrot.lane.b32.xlu0 %v527, 6
      %v1404 = vpop.permute.xlu0 %1403
      %1405 = vrot.lane.b32.xlu0 %v530, 6
      %v1406 = vpop.permute.xlu0 %1405
      %1407 = vrot.lane.b32.xlu0 %v532, 6
      %v1408 = vpop.permute.xlu0 %1407
      %1409 = vrot.lane.b32.xlu0 %v535, 6
      %v1410 = vpop.permute.xlu0 %1409
      %1411 = vrot.lane.b32.xlu0 %v537, 6
      %v1412 = vpop.permute.xlu0 %1411
      %1413 = vrot.lane.b32.xlu0 %v540, 6
      %v1414 = vpop.permute.xlu0 %1413
      %1415 = vrot.lane.b32.xlu0 %v542, 6
      %v1416 = vpop.permute.xlu0 %1415
      %1417 = vrot.lane.b32.xlu0 %v545, 6
      %v1418 = vpop.permute.xlu0 %1417
      %1419 = vrot.lane.b32.xlu0 %v547, 6
      %v1420 = vpop.permute.xlu0 %1419
      %1421 = vrot.lane.b32.xlu0 %v550, 6
      %v1422 = vpop.permute.xlu0 %1421
      %1423 = vrot.lane.b32.xlu0 %v552, 6
      %v1424 = vpop.permute.xlu0 %1423
      %1457 = vrot.lane.b32.xlu0 %v589, 9
      %v1458 = vpop.permute.xlu0 %1457
      %1459 = vrot.lane.b32.xlu0 %v590, 9
      %v1460 = vpop.permute.xlu0 %1459
      %1461 = vrot.lane.b32.xlu0 %v591, 9
      %v1462 = vpop.permute.xlu0 %1461
      %1463 = vrot.lane.b32.xlu0 %v592, 9
      %v1464 = vpop.permute.xlu0 %1463
      %1465 = vrot.lane.b32.xlu0 %v593, 9
      %v1466 = vpop.permute.xlu0 %1465
      %1467 = vrot.lane.b32.xlu0 %v594, 9
      %v1468 = vpop.permute.xlu0 %1467
      %1469 = vrot.lane.b32.xlu0 %v595, 9
      %v1470 = vpop.permute.xlu0 %1469
      %1471 = vrot.lane.b32.xlu0 %v596, 9
      %v1472 = vpop.permute.xlu0 %1471
      %1473 = vrot.lane.b32.xlu0 %v597, 9
      %v1474 = vpop.permute.xlu0 %1473
      %1475 = vrot.lane.b32.xlu0 %v598, 9
      %v1476 = vpop.permute.xlu0 %1475
      %1477 = vrot.lane.b32.xlu0 %v599, 9
      %v1478 = vpop.permute.xlu0 %1477
      %1479 = vrot.lane.b32.xlu0 %v600, 9
      %v1480 = vpop.permute.xlu0 %1479
      %1481 = vrot.lane.b32.xlu0 %v601, 9
      %v1482 = vpop.permute.xlu0 %1481
      %1483 = vrot.lane.b32.xlu0 %v602, 9
      %v1484 = vpop.permute.xlu0 %1483
      %1485 = vrot.lane.b32.xlu0 %v603, 9
      %v1486 = vpop.permute.xlu0 %1485
      %1487 = vrot.lane.b32.xlu0 %v604, 9
      %v1488 = vpop.permute.xlu0 %1487
      %1489 = vrot.lane.b32.xlu0 %v605, 9
      %v1490 = vpop.permute.xlu0 %1489
      %1491 = vrot.lane.b32.xlu0 %v606, 9
      %v1492 = vpop.permute.xlu0 %1491
      %1493 = vrot.lane.b32.xlu0 %v607, 9
      %v1494 = vpop.permute.xlu0 %1493
      %1495 = vrot.lane.b32.xlu0 %v608, 9
      %v1496 = vpop.permute.xlu0 %1495
      %1497 = vrot.lane.b32.xlu0 %v609, 9
      %v1498 = vpop.permute.xlu0 %1497
      %1499 = vrot.lane.b32.xlu0 %v610, 9
      %v1500 = vpop.permute.xlu0 %1499
      %1501 = vrot.lane.b32.xlu0 %v611, 9
      %v1502 = vpop.permute.xlu0 %1501
      %1503 = vrot.lane.b32.xlu0 %v612, 9
      %v1504 = vpop.permute.xlu0 %1503
      %1505 = vrot.lane.b32.xlu0 %v613, 9
      %v1506 = vpop.permute.xlu0 %1505
      %1507 = vrot.lane.b32.xlu0 %v614, 9
      %v1508 = vpop.permute.xlu0 %1507
      %1509 = vrot.lane.b32.xlu0 %v615, 9
      %v1510 = vpop.permute.xlu0 %1509
      %1511 = vrot.lane.b32.xlu0 %v616, 9
      %v1512 = vpop.permute.xlu0 %1511
      %1513 = vrot.lane.b32.xlu0 %v617, 9
      %v1514 = vpop.permute.xlu0 %1513
      %1515 = vrot.lane.b32.xlu0 %v618, 9
      %v1516 = vpop.permute.xlu0 %1515
      %1517 = vrot.lane.b32.xlu0 %v619, 9
      %v1518 = vpop.permute.xlu0 %1517
      %1519 = vrot.lane.b32.xlu0 %v620, 9
      %v1520 = vpop.permute.xlu0 %1519
      %1553 = vrot.lane.b32.xlu0 %v703, 12
      %v1554 = vpop.permute.xlu0 %1553
      %1555 = vrot.lane.b32.xlu0 %v705, 12
      %v1556 = vpop.permute.xlu0 %1555
      %1557 = vrot.lane.b32.xlu0 %v708, 12
      %v1558 = vpop.permute.xlu0 %1557
      %1559 = vrot.lane.b32.xlu0 %v710, 12
      %v1560 = vpop.permute.xlu0 %1559
      %1561 = vrot.lane.b32.xlu0 %v713, 12
      %v1562 = vpop.permute.xlu0 %1561
      %1563 = vrot.lane.b32.xlu0 %v715, 12
      %v1564 = vpop.permute.xlu0 %1563
      %1565 = vrot.lane.b32.xlu0 %v718, 12
      %v1566 = vpop.permute.xlu0 %1565
      %1567 = vrot.lane.b32.xlu0 %v720, 12
      %v1568 = vpop.permute.xlu0 %1567
      %1569 = vrot.lane.b32.xlu0 %v723, 12
      %v1570 = vpop.permute.xlu0 %1569
      %1571 = vrot.lane.b32.xlu0 %v725, 12
      %v1572 = vpop.permute.xlu0 %1571
      %1573 = vrot.lane.b32.xlu0 %v728, 12
      %v1574 = vpop.permute.xlu0 %1573
      %1575 = vrot.lane.b32.xlu0 %v730, 12
      %v1576 = vpop.permute.xlu0 %1575
      %1577 = vrot.lane.b32.xlu0 %v733, 12
      %v1578 = vpop.permute.xlu0 %1577
      %1579 = vrot.lane.b32.xlu0 %v735, 12
      %v1580 = vpop.permute.xlu0 %1579
      %1581 = vrot.lane.b32.xlu0 %v738, 12
      %v1582 = vpop.permute.xlu0 %1581
      %1583 = vrot.lane.b32.xlu0 %v740, 12
      %v1584 = vpop.permute.xlu0 %1583
      %1585 = vrot.lane.b32.xlu0 %v743, 12
      %v1586 = vpop.permute.xlu0 %1585
      %1587 = vrot.lane.b32.xlu0 %v745, 12
      %v1588 = vpop.permute.xlu0 %1587
      %1589 = vrot.lane.b32.xlu0 %v748, 12
      %v1590 = vpop.permute.xlu0 %1589
      %1591 = vrot.lane.b32.xlu0 %v750, 12
      %v1592 = vpop.permute.xlu0 %1591
      %1593 = vrot.lane.b32.xlu0 %v753, 12
      %v1594 = vpop.permute.xlu0 %1593
      %1595 = vrot.lane.b32.xlu0 %v755, 12
      %v1596 = vpop.permute.xlu0 %1595
      %1597 = vrot.lane.b32.xlu0 %v758, 12
      %v1598 = vpop.permute.xlu0 %1597
      %1599 = vrot.lane.b32.xlu0 %v760, 12
      %v1600 = vpop.permute.xlu0 %1599
      %1601 = vrot.lane.b32.xlu0 %v763, 12
      %v1602 = vpop.permute.xlu0 %1601
      %1603 = vrot.lane.b32.xlu0 %v765, 12
      %v1604 = vpop.permute.xlu0 %1603
      %1605 = vrot.lane.b32.xlu0 %v768, 12
      %v1606 = vpop.permute.xlu0 %1605
      %1607 = vrot.lane.b32.xlu0 %v770, 12
      %v1608 = vpop.permute.xlu0 %1607
      %1609 = vrot.lane.b32.xlu0 %v773, 12
      %v1610 = vpop.permute.xlu0 %1609
      %1611 = vrot.lane.b32.xlu0 %v775, 12
      %v1612 = vpop.permute.xlu0 %1611
      %1613 = vrot.lane.b32.xlu0 %v778, 12
      %v1614 = vpop.permute.xlu0 %1613
      %1615 = vrot.lane.b32.xlu0 %v780, 12
      %v1616 = vpop.permute.xlu0 %1615
      %1649 = vrot.lane.b32.xlu0 %v831, 15
      %v1650 = vpop.permute.xlu0 %1649
      %1651 = vrot.lane.b32.xlu0 %v833, 15
      %v1652 = vpop.permute.xlu0 %1651
      %1653 = vrot.lane.b32.xlu0 %v836, 15
      %v1654 = vpop.permute.xlu0 %1653
      %1655 = vrot.lane.b32.xlu0 %v838, 15
      %v1656 = vpop.permute.xlu0 %1655
      %1657 = vrot.lane.b32.xlu0 %v841, 15
      %v1658 = vpop.permute.xlu0 %1657
      %1659 = vrot.lane.b32.xlu0 %v843, 15
      %v1660 = vpop.permute.xlu0 %1659
      %1661 = vrot.lane.b32.xlu0 %v846, 15
      %v1662 = vpop.permute.xlu0 %1661
      %1663 = vrot.lane.b32.xlu0 %v848, 15
      %v1664 = vpop.permute.xlu0 %1663
      %1665 = vrot.lane.b32.xlu0 %v851, 15
      %v1666 = vpop.permute.xlu0 %1665
      %1667 = vrot.lane.b32.xlu0 %v853, 15
      %v1668 = vpop.permute.xlu0 %1667
      %1669 = vrot.lane.b32.xlu0 %v856, 15
      %v1670 = vpop.permute.xlu0 %1669
      %1671 = vrot.lane.b32.xlu0 %v858, 15
      %v1672 = vpop.permute.xlu0 %1671
      %1673 = vrot.lane.b32.xlu0 %v861, 15
      %v1674 = vpop.permute.xlu0 %1673
      %1675 = vrot.lane.b32.xlu0 %v863, 15
      %v1676 = vpop.permute.xlu0 %1675
      %1677 = vrot.lane.b32.xlu0 %v866, 15
      %v1678 = vpop.permute.xlu0 %1677
      %1679 = vrot.lane.b32.xlu0 %v868, 15
      %v1680 = vpop.permute.xlu0 %1679
      %1681 = vrot.lane.b32.xlu0 %v871, 15
      %v1682 = vpop.permute.xlu0 %1681
      %1683 = vrot.lane.b32.xlu0 %v873, 15
      %v1684 = vpop.permute.xlu0 %1683
      %1685 = vrot.lane.b32.xlu0 %v876, 15
      %v1686 = vpop.permute.xlu0 %1685
      %1687 = vrot.lane.b32.xlu0 %v878, 15
      %v1688 = vpop.permute.xlu0 %1687
      %1689 = vrot.lane.b32.xlu0 %v881, 15
      %v1690 = vpop.permute.xlu0 %1689
      %1691 = vrot.lane.b32.xlu0 %v883, 15
      %v1692 = vpop.permute.xlu0 %1691
      %1693 = vrot.lane.b32.xlu0 %v886, 15
      %v1694 = vpop.permute.xlu0 %1693
      %1695 = vrot.lane.b32.xlu0 %v888, 15
      %v1696 = vpop.permute.xlu0 %1695
      %1697 = vrot.lane.b32.xlu0 %v891, 15
      %v1698 = vpop.permute.xlu0 %1697
      %1699 = vrot.lane.b32.xlu0 %v893, 15
      %v1700 = vpop.permute.xlu0 %1699
      %1701 = vrot.lane.b32.xlu0 %v896, 15
      %v1702 = vpop.permute.xlu0 %1701
      %1703 = vrot.lane.b32.xlu0 %v898, 15
      %v1704 = vpop.permute.xlu0 %1703
      %1705 = vrot.lane.b32.xlu0 %v901, 15
      %v1706 = vpop.permute.xlu0 %1705
      %1707 = vrot.lane.b32.xlu0 %v903, 15
      %v1708 = vpop.permute.xlu0 %1707
      %1709 = vrot.lane.b32.xlu0 %v906, 15
      %v1710 = vpop.permute.xlu0 %1709
      %1711 = vrot.lane.b32.xlu0 %v908, 15
      %v1712 = vpop.permute.xlu0 %1711
      %1745 = vrot.lane.b32.xlu0 %v945, 18
      %v1746 = vpop.permute.xlu0 %1745
      %1747 = vrot.lane.b32.xlu0 %v946, 18
      %v1748 = vpop.permute.xlu0 %1747
      %1749 = vrot.lane.b32.xlu0 %v947, 18
      %v1750 = vpop.permute.xlu0 %1749
      %1751 = vrot.lane.b32.xlu0 %v948, 18
      %v1752 = vpop.permute.xlu0 %1751
      %1753 = vrot.lane.b32.xlu0 %v949, 18
      %v1754 = vpop.permute.xlu0 %1753
      %1755 = vrot.lane.b32.xlu0 %v950, 18
      %v1756 = vpop.permute.xlu0 %1755
      %1757 = vrot.lane.b32.xlu0 %v951, 18
      %v1758 = vpop.permute.xlu0 %1757
      %1759 = vrot.lane.b32.xlu0 %v952, 18
      %v1760 = vpop.permute.xlu0 %1759
      %1761 = vrot.lane.b32.xlu0 %v953, 18
      %v1762 = vpop.permute.xlu0 %1761
      %1763 = vrot.lane.b32.xlu0 %v954, 18
      %v1764 = vpop.permute.xlu0 %1763
      %1765 = vrot.lane.b32.xlu0 %v955, 18
      %v1766 = vpop.permute.xlu0 %1765
      %1767 = vrot.lane.b32.xlu0 %v956, 18
      %v1768 = vpop.permute.xlu0 %1767
      %1769 = vrot.lane.b32.xlu0 %v957, 18
      %v1770 = vpop.permute.xlu0 %1769
      %1771 = vrot.lane.b32.xlu0 %v958, 18
      %v1772 = vpop.permute.xlu0 %1771
      %1773 = vrot.lane.b32.xlu0 %v959, 18
      %v1774 = vpop.permute.xlu0 %1773
      %1775 = vrot.lane.b32.xlu0 %v960, 18
      %v1776 = vpop.permute.xlu0 %1775
      %1777 = vrot.lane.b32.xlu0 %v961, 18
      %v1778 = vpop.permute.xlu0 %1777
      %1779 = vrot.lane.b32.xlu0 %v962, 18
      %v1780 = vpop.permute.xlu0 %1779
      %1781 = vrot.lane.b32.xlu0 %v963, 18
      %v1782 = vpop.permute.xlu0 %1781
      %1783 = vrot.lane.b32.xlu0 %v964, 18
      %v1784 = vpop.permute.xlu0 %1783
      %1785 = vrot.lane.b32.xlu0 %v965, 18
      %v1786 = vpop.permute.xlu0 %1785
      %1787 = vrot.lane.b32.xlu0 %v966, 18
      %v1788 = vpop.permute.xlu0 %1787
      %1789 = vrot.lane.b32.xlu0 %v967, 18
      %v1790 = vpop.permute.xlu0 %1789
      %1791 = vrot.lane.b32.xlu0 %v968, 18
      %v1792 = vpop.permute.xlu0 %1791
      %1793 = vrot.lane.b32.xlu0 %v969, 18
      %v1794 = vpop.permute.xlu0 %1793
      %1795 = vrot.lane.b32.xlu0 %v970, 18
      %v1796 = vpop.permute.xlu0 %1795
      %1797 = vrot.lane.b32.xlu0 %v971, 18
      %v1798 = vpop.permute.xlu0 %1797
      %1799 = vrot.lane.b32.xlu0 %v972, 18
      %v1800 = vpop.permute.xlu0 %1799
      %1801 = vrot.lane.b32.xlu0 %v973, 18
      %v1802 = vpop.permute.xlu0 %1801
      %1803 = vrot.lane.b32.xlu0 %v974, 18
      %v1804 = vpop.permute.xlu0 %1803
      %1805 = vrot.lane.b32.xlu0 %v975, 18
      %v1806 = vpop.permute.xlu0 %1805
      %1807 = vrot.lane.b32.xlu0 %v976, 18
      %v1808 = vpop.permute.xlu0 %1807
      %1841 = vrot.lane.b32.xlu0 %v1059, 21
      %v1842 = vpop.permute.xlu0 %1841
      %1843 = vrot.lane.b32.xlu0 %v1061, 21
      %v1844 = vpop.permute.xlu0 %1843
      %1845 = vrot.lane.b32.xlu0 %v1064, 21
      %v1846 = vpop.permute.xlu0 %1845
      %1847 = vrot.lane.b32.xlu0 %v1066, 21
      %v1848 = vpop.permute.xlu0 %1847
      %1849 = vrot.lane.b32.xlu0 %v1069, 21
      %v1850 = vpop.permute.xlu0 %1849
      %1851 = vrot.lane.b32.xlu0 %v1071, 21
      %v1852 = vpop.permute.xlu0 %1851
      %1853 = vrot.lane.b32.xlu0 %v1074, 21
      %v1854 = vpop.permute.xlu0 %1853
      %1855 = vrot.lane.b32.xlu0 %v1076, 21
      %v1856 = vpop.permute.xlu0 %1855
      %1857 = vrot.lane.b32.xlu0 %v1079, 21
      %v1858 = vpop.permute.xlu0 %1857
      %1859 = vrot.lane.b32.xlu0 %v1081, 21
      %v1860 = vpop.permute.xlu0 %1859
      %1861 = vrot.lane.b32.xlu0 %v1084, 21
      %v1862 = vpop.permute.xlu0 %1861
      %1863 = vrot.lane.b32.xlu0 %v1086, 21
      %v1864 = vpop.permute.xlu0 %1863
      %1865 = vrot.lane.b32.xlu0 %v1089, 21
      %v1866 = vpop.permute.xlu0 %1865
      %1867 = vrot.lane.b32.xlu0 %v1091, 21
      %v1868 = vpop.permute.xlu0 %1867
      %1869 = vrot.lane.b32.xlu0 %v1094, 21
      %v1870 = vpop.permute.xlu0 %1869
      %1871 = vrot.lane.b32.xlu0 %v1096, 21
      %v1872 = vpop.permute.xlu0 %1871
      %1873 = vrot.lane.b32.xlu0 %v1099, 21
      %v1874 = vpop.permute.xlu0 %1873
      %1875 = vrot.lane.b32.xlu0 %v1101, 21
      %v1876 = vpop.permute.xlu0 %1875
      %1877 = vrot.lane.b32.xlu0 %v1104, 21
      %v1878 = vpop.permute.xlu0 %1877
      %1879 = vrot.lane.b32.xlu0 %v1106, 21
      %v1880 = vpop.permute.xlu0 %1879
      %1881 = vrot.lane.b32.xlu0 %v1109, 21
      %v1882 = vpop.permute.xlu0 %1881
      %1883 = vrot.lane.b32.xlu0 %v1111, 21
      %v1884 = vpop.permute.xlu0 %1883
      %1885 = vrot.lane.b32.xlu0 %v1114, 21
      %v1886 = vpop.permute.xlu0 %1885
      %1887 = vrot.lane.b32.xlu0 %v1116, 21
      %v1888 = vpop.permute.xlu0 %1887
      %1889 = vrot.lane.b32.xlu0 %v1119, 21
      %v1890 = vpop.permute.xlu0 %1889
      %1891 = vrot.lane.b32.xlu0 %v1121, 21
      %v1892 = vpop.permute.xlu0 %1891
      %1893 = vrot.lane.b32.xlu0 %v1124, 21
      %v1894 = vpop.permute.xlu0 %1893
      %1895 = vrot.lane.b32.xlu0 %v1126, 21
      %v1896 = vpop.permute.xlu0 %1895
      %1897 = vrot.lane.b32.xlu0 %v1129, 21
      %v1898 = vpop.permute.xlu0 %1897
      %1899 = vrot.lane.b32.xlu0 %v1131, 21
      %v1900 = vpop.permute.xlu0 %1899
      %1901 = vrot.lane.b32.xlu0 %v1134, 21
      %v1902 = vpop.permute.xlu0 %1901
      %1903 = vrot.lane.b32.xlu0 %v1136, 21
      %v1904 = vpop.permute.xlu0 %1903
      %1937 = vrot.lane.b32.xlu0 %v1187, 24
      %v1938 = vpop.permute.xlu0 %1937
      %1939 = vrot.lane.b32.xlu0 %v1189, 24
      %v1940 = vpop.permute.xlu0 %1939
      %1941 = vrot.lane.b32.xlu0 %v1192, 24
      %v1942 = vpop.permute.xlu0 %1941
      %1943 = vrot.lane.b32.xlu0 %v1194, 24
      %v1944 = vpop.permute.xlu0 %1943
      %1945 = vrot.lane.b32.xlu0 %v1197, 24
      %v1946 = vpop.permute.xlu0 %1945
      %1947 = vrot.lane.b32.xlu0 %v1199, 24
      %v1948 = vpop.permute.xlu0 %1947
      %1949 = vrot.lane.b32.xlu0 %v1202, 24
      %v1950 = vpop.permute.xlu0 %1949
      %1951 = vrot.lane.b32.xlu0 %v1204, 24
      %v1952 = vpop.permute.xlu0 %1951
      %1953 = vrot.lane.b32.xlu0 %v1207, 24
      %v1954 = vpop.permute.xlu0 %1953
      %1955 = vrot.lane.b32.xlu0 %v1209, 24
      %v1956 = vpop.permute.xlu0 %1955
      %1957 = vrot.lane.b32.xlu0 %v1212, 24
      %v1958 = vpop.permute.xlu0 %1957
      %1959 = vrot.lane.b32.xlu0 %v1214, 24
      %v1960 = vpop.permute.xlu0 %1959
      %1961 = vrot.lane.b32.xlu0 %v1217, 24
      %v1962 = vpop.permute.xlu0 %1961
      %1963 = vrot.lane.b32.xlu0 %v1219, 24
      %v1964 = vpop.permute.xlu0 %1963
      %1965 = vrot.lane.b32.xlu0 %v1222, 24
      %v1966 = vpop.permute.xlu0 %1965
      %1967 = vrot.lane.b32.xlu0 %v1224, 24
      %v1968 = vpop.permute.xlu0 %1967
      %1969 = vrot.lane.b32.xlu0 %v1227, 24
      %v1970 = vpop.permute.xlu0 %1969
      %1971 = vrot.lane.b32.xlu0 %v1229, 24
      %v1972 = vpop.permute.xlu0 %1971
      %1973 = vrot.lane.b32.xlu0 %v1232, 24
      %v1974 = vpop.permute.xlu0 %1973
      %1975 = vrot.lane.b32.xlu0 %v1234, 24
      %v1976 = vpop.permute.xlu0 %1975
      %1977 = vrot.lane.b32.xlu0 %v1237, 24
      %v1978 = vpop.permute.xlu0 %1977
      %1979 = vrot.lane.b32.xlu0 %v1239, 24
      %v1980 = vpop.permute.xlu0 %1979
      %1981 = vrot.lane.b32.xlu0 %v1242, 24
      %v1982 = vpop.permute.xlu0 %1981
      %1983 = vrot.lane.b32.xlu0 %v1244, 24
      %v1984 = vpop.permute.xlu0 %1983
      %1985 = vrot.lane.b32.xlu0 %v1247, 24
      %v1986 = vpop.permute.xlu0 %1985
      %1987 = vrot.lane.b32.xlu0 %v1249, 24
      %v1988 = vpop.permute.xlu0 %1987
      %1989 = vrot.lane.b32.xlu0 %v1252, 24
      %v1990 = vpop.permute.xlu0 %1989
      %1991 = vrot.lane.b32.xlu0 %v1254, 24
      %v1992 = vpop.permute.xlu0 %1991
      %1993 = vrot.lane.b32.xlu0 %v1257, 24
      %v1994 = vpop.permute.xlu0 %1993
      %1995 = vrot.lane.b32.xlu0 %v1259, 24
      %v1996 = vpop.permute.xlu0 %1995
      %1997 = vrot.lane.b32.xlu0 %v1262, 24
      %v1998 = vpop.permute.xlu0 %1997
      %1999 = vrot.lane.b32.xlu0 %v1264, 24
      %v2000 = vpop.permute.xlu0 %1999
      %vm2033 = vcmask 23552
      %v2034 = vsel %vm2033, %v231, %v1266
      %v2035 = vsel %vm2033, %v232, %v1268
      %v2036 = vsel %vm2033, %v233, %v1270
      %v2037 = vsel %vm2033, %v234, %v1272
      %v2038 = vsel %vm2033, %v235, %v1274
      %v2039 = vsel %vm2033, %v236, %v1276
      %v2040 = vsel %vm2033, %v237, %v1278
      %v2041 = vsel %vm2033, %v238, %v1280
      %v2042 = vsel %vm2033, %v239, %v1282
      %v2043 = vsel %vm2033, %v240, %v1284
      %v2044 = vsel %vm2033, %v241, %v1286
      %v2045 = vsel %vm2033, %v242, %v1288
      %v2046 = vsel %vm2033, %v243, %v1290
      %v2047 = vsel %vm2033, %v244, %v1292
      %v2048 = vsel %vm2033, %v245, %v1294
      %v2049 = vsel %vm2033, %v246, %v1296
      %v2050 = vsel %vm2033, %v247, %v1298
      %v2051 = vsel %vm2033, %v248, %v1300
      %v2052 = vsel %vm2033, %v249, %v1302
      %v2053 = vsel %vm2033, %v250, %v1304
      %v2054 = vsel %vm2033, %v251, %v1306
      %v2055 = vsel %vm2033, %v252, %v1308
      %v2056 = vsel %vm2033, %v253, %v1310
      %v2057 = vsel %vm2033, %v254, %v1312
      %v2058 = vsel %vm2033, %v255, %v1314
      %v2059 = vsel %vm2033, %v256, %v1316
      %v2060 = vsel %vm2033, %v257, %v1318
      %v2061 = vsel %vm2033, %v258, %v1320
      %v2062 = vsel %vm2033, %v259, %v1322
      %v2063 = vsel %vm2033, %v260, %v1324
      %v2064 = vsel %vm2033, %v261, %v1326
      %v2065 = vsel %vm2033, %v262, %v1328
      %vm2066 = vcmask 48128
      %v2067 = vsel %vm2066, %v2034, %v1362
      %v2068 = vsel %vm2066, %v2035, %v1364
      %v2069 = vsel %vm2066, %v2036, %v1366
      %v2070 = vsel %vm2066, %v2037, %v1368
      %v2071 = vsel %vm2066, %v2038, %v1370
      %v2072 = vsel %vm2066, %v2039, %v1372
      %v2073 = vsel %vm2066, %v2040, %v1374
      %v2074 = vsel %vm2066, %v2041, %v1376
      %v2075 = vsel %vm2066, %v2042, %v1378
      %v2076 = vsel %vm2066, %v2043, %v1380
      %v2077 = vsel %vm2066, %v2044, %v1382
      %v2078 = vsel %vm2066, %v2045, %v1384
      %v2079 = vsel %vm2066, %v2046, %v1386
      %v2080 = vsel %vm2066, %v2047, %v1388
      %v2081 = vsel %vm2066, %v2048, %v1390
      %v2082 = vsel %vm2066, %v2049, %v1392
      %v2083 = vsel %vm2066, %v2050, %v1394
      %v2084 = vsel %vm2066, %v2051, %v1396
      %v2085 = vsel %vm2066, %v2052, %v1398
      %v2086 = vsel %vm2066, %v2053, %v1400
      %v2087 = vsel %vm2066, %v2054, %v1402
      %v2088 = vsel %vm2066, %v2055, %v1404
      %v2089 = vsel %vm2066, %v2056, %v1406
      %v2090 = vsel %vm2066, %v2057, %v1408
      %v2091 = vsel %vm2066, %v2058, %v1410
      %v2092 = vsel %vm2066, %v2059, %v1412
      %v2093 = vsel %vm2066, %v2060, %v1414
      %v2094 = vsel %vm2066, %v2061, %v1416
      %v2095 = vsel %vm2066, %v2062, %v1418
      %v2096 = vsel %vm2066, %v2063, %v1420
      %v2097 = vsel %vm2066, %v2064, %v1422
      %v2098 = vsel %vm2066, %v2065, %v1424
      %vm2099 = vcmask 72704
      %v2100 = vsel %vm2099, %v2067, %v1458
      %v2101 = vsel %vm2099, %v2068, %v1460
      %v2102 = vsel %vm2099, %v2069, %v1462
      %v2103 = vsel %vm2099, %v2070, %v1464
      %v2104 = vsel %vm2099, %v2071, %v1466
      %v2105 = vsel %vm2099, %v2072, %v1468
      %v2106 = vsel %vm2099, %v2073, %v1470
      %v2107 = vsel %vm2099, %v2074, %v1472
      %v2108 = vsel %vm2099, %v2075, %v1474
      %v2109 = vsel %vm2099, %v2076, %v1476
      %v2110 = vsel %vm2099, %v2077, %v1478
      %v2111 = vsel %vm2099, %v2078, %v1480
      %v2112 = vsel %vm2099, %v2079, %v1482
      %v2113 = vsel %vm2099, %v2080, %v1484
      %v2114 = vsel %vm2099, %v2081, %v1486
      %v2115 = vsel %vm2099, %v2082, %v1488
      %v2116 = vsel %vm2099, %v2083, %v1490
      %v2117 = vsel %vm2099, %v2084, %v1492
      %v2118 = vsel %vm2099, %v2085, %v1494
      %v2119 = vsel %vm2099, %v2086, %v1496
      %v2120 = vsel %vm2099, %v2087, %v1498
      %v2121 = vsel %vm2099, %v2088, %v1500
      %v2122 = vsel %vm2099, %v2089, %v1502
      %v2123 = vsel %vm2099, %v2090, %v1504
      %v2124 = vsel %vm2099, %v2091, %v1506
      %v2125 = vsel %vm2099, %v2092, %v1508
      %v2126 = vsel %vm2099, %v2093, %v1510
      %v2127 = vsel %vm2099, %v2094, %v1512
      %v2128 = vsel %vm2099, %v2095, %v1514
      %v2129 = vsel %vm2099, %v2096, %v1516
      %v2130 = vsel %vm2099, %v2097, %v1518
      %v2131 = vsel %vm2099, %v2098, %v1520
      %vm2132 = vcmask 97280
      %v2133 = vsel %vm2132, %v2100, %v1554
      %v2134 = vsel %vm2132, %v2101, %v1556
      %v2135 = vsel %vm2132, %v2102, %v1558
      %v2136 = vsel %vm2132, %v2103, %v1560
      %v2137 = vsel %vm2132, %v2104, %v1562
      %v2138 = vsel %vm2132, %v2105, %v1564
      %v2139 = vsel %vm2132, %v2106, %v1566
      %v2140 = vsel %vm2132, %v2107, %v1568
      %v2141 = vsel %vm2132, %v2108, %v1570
      %v2142 = vsel %vm2132, %v2109, %v1572
      %v2143 = vsel %vm2132, %v2110, %v1574
      %v2144 = vsel %vm2132, %v2111, %v1576
      %v2145 = vsel %vm2132, %v2112, %v1578
      %v2146 = vsel %vm2132, %v2113, %v1580
      %v2147 = vsel %vm2132, %v2114, %v1582
      %v2148 = vsel %vm2132, %v2115, %v1584
      %v2149 = vsel %vm2132, %v2116, %v1586
      %v2150 = vsel %vm2132, %v2117, %v1588
      %v2151 = vsel %vm2132, %v2118, %v1590
      %v2152 = vsel %vm2132, %v2119, %v1592
      %v2153 = vsel %vm2132, %v2120, %v1594
      %v2154 = vsel %vm2132, %v2121, %v1596
      %v2155 = vsel %vm2132, %v2122, %v1598
      %v2156 = vsel %vm2132, %v2123, %v1600
      %v2157 = vsel %vm2132, %v2124, %v1602
      %v2158 = vsel %vm2132, %v2125, %v1604
      %v2159 = vsel %vm2132, %v2126, %v1606
      %v2160 = vsel %vm2132, %v2127, %v1608
      %v2161 = vsel %vm2132, %v2128, %v1610
      %v2162 = vsel %vm2132, %v2129, %v1612
      %v2163 = vsel %vm2132, %v2130, %v1614
      %v2164 = vsel %vm2132, %v2131, %v1616
      %vm2165 = vcmask 121856
      %v2166 = vsel %vm2165, %v2133, %v1650
      %v2167 = vsel %vm2165, %v2134, %v1652
      %v2168 = vsel %vm2165, %v2135, %v1654
      %v2169 = vsel %vm2165, %v2136, %v1656
      %v2170 = vsel %vm2165, %v2137, %v1658
      %v2171 = vsel %vm2165, %v2138, %v1660
      %v2172 = vsel %vm2165, %v2139, %v1662
      %v2173 = vsel %vm2165, %v2140, %v1664
      %v2174 = vsel %vm2165, %v2141, %v1666
      %v2175 = vsel %vm2165, %v2142, %v1668
      %v2176 = vsel %vm2165, %v2143, %v1670
      %v2177 = vsel %vm2165, %v2144, %v1672
      %v2178 = vsel %vm2165, %v2145, %v1674
      %v2179 = vsel %vm2165, %v2146, %v1676
      %v2180 = vsel %vm2165, %v2147, %v1678
      %v2181 = vsel %vm2165, %v2148, %v1680
      %v2182 = vsel %vm2165, %v2149, %v1682
      %v2183 = vsel %vm2165, %v2150, %v1684
      %v2184 = vsel %vm2165, %v2151, %v1686
      %v2185 = vsel %vm2165, %v2152, %v1688
      %v2186 = vsel %vm2165, %v2153, %v1690
      %v2187 = vsel %vm2165, %v2154, %v1692
      %v2188 = vsel %vm2165, %v2155, %v1694
      %v2189 = vsel %vm2165, %v2156, %v1696
      %v2190 = vsel %vm2165, %v2157, %v1698
      %v2191 = vsel %vm2165, %v2158, %v1700
      %v2192 = vsel %vm2165, %v2159, %v1702
      %v2193 = vsel %vm2165, %v2160, %v1704
      %v2194 = vsel %vm2165, %v2161, %v1706
      %v2195 = vsel %vm2165, %v2162, %v1708
      %v2196 = vsel %vm2165, %v2163, %v1710
      %v2197 = vsel %vm2165, %v2164, %v1712
      %vm2198 = vcmask 146432
      %v2199 = vsel %vm2198, %v2166, %v1746
      %v2200 = vsel %vm2198, %v2167, %v1748
      %v2201 = vsel %vm2198, %v2168, %v1750
      %v2202 = vsel %vm2198, %v2169, %v1752
      %v2203 = vsel %vm2198, %v2170, %v1754
      %v2204 = vsel %vm2198, %v2171, %v1756
      %v2205 = vsel %vm2198, %v2172, %v1758
      %v2206 = vsel %vm2198, %v2173, %v1760
      %v2207 = vsel %vm2198, %v2174, %v1762
      %v2208 = vsel %vm2198, %v2175, %v1764
      %v2209 = vsel %vm2198, %v2176, %v1766
      %v2210 = vsel %vm2198, %v2177, %v1768
      %v2211 = vsel %vm2198, %v2178, %v1770
      %v2212 = vsel %vm2198, %v2179, %v1772
      %v2213 = vsel %vm2198, %v2180, %v1774
      %v2214 = vsel %vm2198, %v2181, %v1776
      %v2215 = vsel %vm2198, %v2182, %v1778
      %v2216 = vsel %vm2198, %v2183, %v1780
      %v2217 = vsel %vm2198, %v2184, %v1782
      %v2218 = vsel %vm2198, %v2185, %v1784
      %v2219 = vsel %vm2198, %v2186, %v1786
      %v2220 = vsel %vm2198, %v2187, %v1788
      %v2221 = vsel %vm2198, %v2188, %v1790
      %v2222 = vsel %vm2198, %v2189, %v1792
      %v2223 = vsel %vm2198, %v2190, %v1794
      %v2224 = vsel %vm2198, %v2191, %v1796
      %v2225 = vsel %vm2198, %v2192, %v1798
      %v2226 = vsel %vm2198, %v2193, %v1800
      %v2227 = vsel %vm2198, %v2194, %v1802
      %v2228 = vsel %vm2198, %v2195, %v1804
      %v2229 = vsel %vm2198, %v2196, %v1806
      %v2230 = vsel %vm2198, %v2197, %v1808
      %vm2231 = vcmask 171008
      %v2232 = vsel %vm2231, %v2199, %v1842
      %v2233 = vsel %vm2231, %v2200, %v1844
      %v2234 = vsel %vm2231, %v2201, %v1846
      %v2235 = vsel %vm2231, %v2202, %v1848
      %v2236 = vsel %vm2231, %v2203, %v1850
      %v2237 = vsel %vm2231, %v2204, %v1852
      %v2238 = vsel %vm2231, %v2205, %v1854
      %v2239 = vsel %vm2231, %v2206, %v1856
      %v2240 = vsel %vm2231, %v2207, %v1858
      %v2241 = vsel %vm2231, %v2208, %v1860
      %v2242 = vsel %vm2231, %v2209, %v1862
      %v2243 = vsel %vm2231, %v2210, %v1864
      %v2244 = vsel %vm2231, %v2211, %v1866
      %v2245 = vsel %vm2231, %v2212, %v1868
      %v2246 = vsel %vm2231, %v2213, %v1870
      %v2247 = vsel %vm2231, %v2214, %v1872
      %v2248 = vsel %vm2231, %v2215, %v1874
      %v2249 = vsel %vm2231, %v2216, %v1876
      %v2250 = vsel %vm2231, %v2217, %v1878
      %v2251 = vsel %vm2231, %v2218, %v1880
      %v2252 = vsel %vm2231, %v2219, %v1882
      %v2253 = vsel %vm2231, %v2220, %v1884
      %v2254 = vsel %vm2231, %v2221, %v1886
      %v2255 = vsel %vm2231, %v2222, %v1888
      %v2256 = vsel %vm2231, %v2223, %v1890
      %v2257 = vsel %vm2231, %v2224, %v1892
      %v2258 = vsel %vm2231, %v2225, %v1894
      %v2259 = vsel %vm2231, %v2226, %v1896
      %v2260 = vsel %vm2231, %v2227, %v1898
      %v2261 = vsel %vm2231, %v2228, %v1900
      %v2262 = vsel %vm2231, %v2229, %v1902
      %v2263 = vsel %vm2231, %v2230, %v1904
      %vm2264 = vcmask 195584
      %v2265 = vsel %vm2264, %v2232, %v1938
      %v2266 = vsel %vm2264, %v2233, %v1940
      %v2267 = vsel %vm2264, %v2234, %v1942
      %v2268 = vsel %vm2264, %v2235, %v1944
      %v2269 = vsel %vm2264, %v2236, %v1946
      %v2270 = vsel %vm2264, %v2237, %v1948
      %v2271 = vsel %vm2264, %v2238, %v1950
      %v2272 = vsel %vm2264, %v2239, %v1952
      %v2273 = vsel %vm2264, %v2240, %v1954
      %v2274 = vsel %vm2264, %v2241, %v1956
      %v2275 = vsel %vm2264, %v2242, %v1958
      %v2276 = vsel %vm2264, %v2243, %v1960
      %v2277 = vsel %vm2264, %v2244, %v1962
      %v2278 = vsel %vm2264, %v2245, %v1964
      %v2279 = vsel %vm2264, %v2246, %v1966
      %v2280 = vsel %vm2264, %v2247, %v1968
      %v2281 = vsel %vm2264, %v2248, %v1970
      %v2282 = vsel %vm2264, %v2249, %v1972
      %v2283 = vsel %vm2264, %v2250, %v1974
      %v2284 = vsel %vm2264, %v2251, %v1976
      %v2285 = vsel %vm2264, %v2252, %v1978
      %v2286 = vsel %vm2264, %v2253, %v1980
      %v2287 = vsel %vm2264, %v2254, %v1982
      %v2288 = vsel %vm2264, %v2255, %v1984
      %v2289 = vsel %vm2264, %v2256, %v1986
      %v2290 = vsel %vm2264, %v2257, %v1988
      %v2291 = vsel %vm2264, %v2258, %v1990
      %v2292 = vsel %vm2264, %v2259, %v1992
      %v2293 = vsel %vm2264, %v2260, %v1994
      %v2294 = vsel %vm2264, %v2261, %v1996
      %v2295 = vsel %vm2264, %v2262, %v1998
      %v2296 = vsel %vm2264, %v2263, %v2000
      %v2297 = vpack.c.bf16 %v2266, %v2265
      %v2298 = vpack.c.bf16 %v2268, %v2267
      %v2299 = vpack.c.bf16 %v2270, %v2269
      %v2300 = vpack.c.bf16 %v2272, %v2271
      %v2301 = vpack.c.bf16 %v2274, %v2273
      %v2302 = vpack.c.bf16 %v2276, %v2275
      %v2303 = vpack.c.bf16 %v2278, %v2277
      %v2304 = vpack.c.bf16 %v2280, %v2279
      %v2305 = vpack.c.bf16 %v2282, %v2281
      %v2306 = vpack.c.bf16 %v2284, %v2283
      %v2307 = vpack.c.bf16 %v2286, %v2285
      %v2308 = vpack.c.bf16 %v2288, %v2287
      %v2309 = vpack.c.bf16 %v2290, %v2289
      %v2310 = vpack.c.bf16 %v2292, %v2291
      %v2311 = vpack.c.bf16 %v2294, %v2293
      %v2312 = vpack.c.bf16 %v2296, %v2295
      %v2313 = vld [vmem:[%s1] sm:$0xf]
      %v2314 = vld [vmem:[%s1 + $0x4] sm:$0xf]
      %v2315 = vld [vmem:[%s1 + $0x8] sm:$0xf]
      %v2316 = vld [vmem:[%s1 + $0xc] sm:$0x3]
      %v2317 = vld [vmem:[%s2] sm:$0x1]
      %v2319 = vlaneseq
      %v2320 = vshrl.u32 %v2319, 7
      %v2321 = vsub.s32 0, %v2320
      %v2322 = vrot.slane %v2317, %v2321
      %v2328 = vunpack.c.l.b16 %v2313
      %v2329 = vunpack.c.l.b16 %v2314
      %v2330 = vunpack.c.l.b16 %v2315
      %v2331 = vunpack.c.l.b16 %v2316
      %v2332 = vpack.c.b16 %v2329, %v2328
      %v2333 = vpack.c.b16 %v2331, %v2330
      %vm2335 = vcmask 220160
      %v2337 = vsel %vm2335, %v2297, 0
      %v2340 = vsel %vm2335, %v2298, 0
      %v2343 = vsel %vm2335, %v2299, 0
      %v2346 = vsel %vm2335, %v2300, 0
      %v2349 = vsel %vm2335, %v2301, 0
      %v2352 = vsel %vm2335, %v2302, 0
      %v2355 = vsel %vm2335, %v2303, 0
      %v2358 = vsel %vm2335, %v2304, 0
      %v2361 = vsel %vm2335, %v2305, 0
      %v2364 = vsel %vm2335, %v2306, 0
      %v2367 = vsel %vm2335, %v2307, 0
      %v2370 = vsel %vm2335, %v2308, 0
      %v2373 = vsel %vm2335, %v2309, 0
      %v2376 = vsel %vm2335, %v2310, 0
      %v2379 = vsel %vm2335, %v2311, 0
      %v2382 = vsel %vm2335, %v2312, 0
      %vm2384 = vcmask 1044480
      %v2385 = vsel %vm2384, 4294967295, 65535
      %v2386 = vsel %vm472, %v2385, 0
      %v2388 = vand.u32 %v2333, %v2386
      %2390 = vmatprep.subr.bf16.mxu0 0
      %2391 = vmatpush1.bf16.msra.mxu0 %v2332
      %2392 = vmatprep.subr.bf16.mxu0 0
      %2393 = vmatpush1.bf16.msra.mxu0 %v2388
      %2394 = vmatprep.subr.bf16.mxu0 0
      %2395 = vmatpush1.bf16.msra.mxu0 0
      %2396 = vmatprep.subr.bf16.mxu0 0
      %2397 = vmatpush1.bf16.msra.mxu0 0
      %2398 = vmatprep.subr.bf16.mxu0 0
      %2399 = vmatpush1.bf16.msra.mxu0 0
      %2400 = vmatprep.subr.bf16.mxu0 0
      %2401 = vmatpush1.bf16.msra.mxu0 0
      %2402 = vmatprep.subr.bf16.mxu0 0
      %2403 = vmatpush1.bf16.msra.mxu0 0
      %2404 = vmatprep.subr.bf16.mxu0 0
      %2405 = vmatpush1.bf16.msra.mxu0 0
      %2406 = vmatprep.subr.bf16.mxu0 0
      %2407 = vmatpush1.bf16.msra.mxu0 0
      %2408 = vmatprep.subr.bf16.mxu0 0
      %2409 = vmatpush1.bf16.msra.mxu0 0
      %2410 = vmatprep.subr.bf16.mxu0 0
      %2411 = vmatpush1.bf16.msra.mxu0 0
      %2412 = vmatprep.subr.bf16.mxu0 0
      %2413 = vmatpush1.bf16.msra.mxu0 0
      %2414 = vmatprep.subr.bf16.mxu0 0
      %2415 = vmatpush1.bf16.msra.mxu0 0
      %2416 = vmatprep.subr.bf16.mxu0 0
      %2417 = vmatpush1.bf16.msra.mxu0 0
      %2418 = vmatprep.subr.bf16.mxu0 0
      %2419 = vmatpush1.bf16.msra.mxu0 0
      %2420 = vmatprep.subr.bf16.mxu0 0
      %2421 = vmatpush1.bf16.msra.mxu0 0
      %2422 = vmatprep.mubr.bf16.mxu0 0
      %2423 = vmatmul.mubr.bf16.gmra.mrb[0].mxu0 %v2337
      %v2424 = vpop.f32.mrb[0].mxu0
      %v2425 = vadd.f32 %v2322, %v2424
      %v2426 = vpop.f32.mrb[0].mxu0
      %v2427 = vpop.f32.mrb[0].mxu0
      %v2428 = vadd.f32 %v2322, %v2427
      %v2429 = vpop.f32.mrb[0].mxu0
      %2430 = vmatprep.mubr.bf16.mxu0 0
      %2431 = vmatmul.mubr.bf16.gmra.mrb[0].mxu0 %v2340
      %v2432 = vpop.f32.mrb[0].mxu0
      %v2433 = vadd.f32 %v2322, %v2432
      %v2434 = vpop.f32.mrb[0].mxu0
      %v2435 = vpop.f32.mrb[0].mxu0
      %v2436 = vadd.f32 %v2322, %v2435
      %v2437 = vpop.f32.mrb[0].mxu0
      %2438 = vmatprep.mubr.bf16.mxu0 0
      %2439 = vmatmul.mubr.bf16.gmra.mrb[0].mxu0 %v2343
      %v2440 = vpop.f32.mrb[0].mxu0
      %v2441 = vadd.f32 %v2322, %v2440
      %v2442 = vpop.f32.mrb[0].mxu0
      %v2443 = vpop.f32.mrb[0].mxu0
      %v2444 = vadd.f32 %v2322, %v2443
      %v2445 = vpop.f32.mrb[0].mxu0
      %2446 = vmatprep.mubr.bf16.mxu0 0
      %2447 = vmatmul.mubr.bf16.gmra.mrb[0].mxu0 %v2346
      %v2448 = vpop.f32.mrb[0].mxu0
      %v2449 = vadd.f32 %v2322, %v2448
      %v2450 = vpop.f32.mrb[0].mxu0
      %v2451 = vpop.f32.mrb[0].mxu0
      %v2452 = vadd.f32 %v2322, %v2451
      %v2453 = vpop.f32.mrb[0].mxu0
      %2454 = vmatprep.mubr.bf16.mxu0 0
      %2455 = vmatmul.mubr.bf16.gmra.mrb[0].mxu0 %v2349
      %v2456 = vpop.f32.mrb[0].mxu0
      %v2457 = vadd.f32 %v2322, %v2456
      %v2458 = vpop.f32.mrb[0].mxu0
      %v2459 = vpop.f32.mrb[0].mxu0
      %v2460 = vadd.f32 %v2322, %v2459
      %v2461 = vpop.f32.mrb[0].mxu0
      %2462 = vmatprep.mubr.bf16.mxu0 0
      %2463 = vmatmul.mubr.bf16.gmra.mrb[0].mxu0 %v2352
      %v2464 = vpop.f32.mrb[0].mxu0
      %v2465 = vadd.f32 %v2322, %v2464
      %v2466 = vpop.f32.mrb[0].mxu0
      %v2467 = vpop.f32.mrb[0].mxu0
      %v2468 = vadd.f32 %v2322, %v2467
      %v2469 = vpop.f32.mrb[0].mxu0
      %2470 = vmatprep.mubr.bf16.mxu0 0
      %2471 = vmatmul.mubr.bf16.gmra.mrb[0].mxu0 %v2355
      %v2472 = vpop.f32.mrb[0].mxu0
      %v2473 = vadd.f32 %v2322, %v2472
      %v2474 = vpop.f32.mrb[0].mxu0
      %v2475 = vpop.f32.mrb[0].mxu0
      %v2476 = vadd.f32 %v2322, %v2475
      %v2477 = vpop.f32.mrb[0].mxu0
      %2478 = vmatprep.mubr.bf16.mxu0 0
      %2479 = vmatmul.mubr.bf16.gmra.mrb[0].mxu0 %v2358
      %v2480 = vpop.f32.mrb[0].mxu0
      %v2481 = vadd.f32 %v2322, %v2480
      %v2482 = vpop.f32.mrb[0].mxu0
      %v2483 = vpop.f32.mrb[0].mxu0
      %v2484 = vadd.f32 %v2322, %v2483
      %v2485 = vpop.f32.mrb[0].mxu0
      %2486 = vmatprep.mubr.bf16.mxu0 0
      %2487 = vmatmul.mubr.bf16.gmra.mrb[0].mxu0 %v2361
      %v2488 = vpop.f32.mrb[0].mxu0
      %v2489 = vadd.f32 %v2322, %v2488
      %v2490 = vpop.f32.mrb[0].mxu0
      %v2491 = vpop.f32.mrb[0].mxu0
      %v2492 = vadd.f32 %v2322, %v2491
      %v2493 = vpop.f32.mrb[0].mxu0
      %2494 = vmatprep.mubr.bf16.mxu0 0
      %2495 = vmatmul.mubr.bf16.gmra.mrb[0].mxu0 %v2364
      %v2496 = vpop.f32.mrb[0].mxu0
      %v2497 = vadd.f32 %v2322, %v2496
      %v2498 = vpop.f32.mrb[0].mxu0
      %v2499 = vpop.f32.mrb[0].mxu0
      %v2500 = vadd.f32 %v2322, %v2499
      %v2501 = vpop.f32.mrb[0].mxu0
      %2502 = vmatprep.mubr.bf16.mxu0 0
      %2503 = vmatmul.mubr.bf16.gmra.mrb[0].mxu0 %v2367
      %v2504 = vpop.f32.mrb[0].mxu0
      %v2505 = vadd.f32 %v2322, %v2504
      %v2506 = vpop.f32.mrb[0].mxu0
      %v2507 = vpop.f32.mrb[0].mxu0
      %v2508 = vadd.f32 %v2322, %v2507
      %v2509 = vpop.f32.mrb[0].mxu0
      %2510 = vmatprep.mubr.bf16.mxu0 0
      %2511 = vmatmul.mubr.bf16.gmra.mrb[0].mxu0 %v2370
      %v2512 = vpop.f32.mrb[0].mxu0
      %v2513 = vadd.f32 %v2322, %v2512
      %v2514 = vpop.f32.mrb[0].mxu0
      %v2515 = vpop.f32.mrb[0].mxu0
      %v2516 = vadd.f32 %v2322, %v2515
      %v2517 = vpop.f32.mrb[0].mxu0
      %2518 = vmatprep.mubr.bf16.mxu0 0
      %2519 = vmatmul.mubr.bf16.gmra.mrb[0].mxu0 %v2373
      %v2520 = vpop.f32.mrb[0].mxu0
      %v2521 = vadd.f32 %v2322, %v2520
      %v2522 = vpop.f32.mrb[0].mxu0
      %v2523 = vpop.f32.mrb[0].mxu0
      %v2524 = vadd.f32 %v2322, %v2523
      %v2525 = vpop.f32.mrb[0].mxu0
      %2526 = vmatprep.mubr.bf16.mxu0 0
      %2527 = vmatmul.mubr.bf16.gmra.mrb[0].mxu0 %v2376
      %v2528 = vpop.f32.mrb[0].mxu0
      %v2529 = vadd.f32 %v2322, %v2528
      %v2530 = vpop.f32.mrb[0].mxu0
      %v2531 = vpop.f32.mrb[0].mxu0
      %v2532 = vadd.f32 %v2322, %v2531
      %v2533 = vpop.f32.mrb[0].mxu0
      %2534 = vmatprep.mubr.bf16.mxu0 0
      %2535 = vmatmul.mubr.bf16.gmra.mrb[0].mxu0 %v2379
      %v2536 = vpop.f32.mrb[0].mxu0
      %v2537 = vadd.f32 %v2322, %v2536
      %v2538 = vpop.f32.mrb[0].mxu0
      %v2539 = vpop.f32.mrb[0].mxu0
      %v2540 = vadd.f32 %v2322, %v2539
      %v2541 = vpop.f32.mrb[0].mxu0
      %2542 = vmatprep.mubr.bf16.mxu0 0
      %2543 = vmatmul.mubr.bf16.gmra.mrb[0].mxu0 %v2382
      %v2544 = vpop.f32.mrb[0].mxu0
      %v2545 = vadd.f32 %v2322, %v2544
      %v2546 = vpop.f32.mrb[0].mxu0
      %v2547 = vpop.f32.mrb[0].mxu0
      %v2548 = vadd.f32 %v2322, %v2547
      %v2549 = vpop.f32.mrb[0].mxu0
      %2550 = vdwg.mxu0
      %v2551 = vsub.f32 0.0, %v2425
      %v2552 = vsub.f32 0.0, %v2428
      %v2553 = vsub.f32 0.0, %v2433
      %v2554 = vsub.f32 0.0, %v2436
      %v2555 = vsub.f32 0.0, %v2441
      %v2556 = vsub.f32 0.0, %v2444
      %v2557 = vsub.f32 0.0, %v2449
      %v2558 = vsub.f32 0.0, %v2452
      %v2559 = vsub.f32 0.0, %v2457
      %v2560 = vsub.f32 0.0, %v2460
      %v2561 = vsub.f32 0.0, %v2465
      %v2562 = vsub.f32 0.0, %v2468
      %v2563 = vsub.f32 0.0, %v2473
      %v2564 = vsub.f32 0.0, %v2476
      %v2565 = vsub.f32 0.0, %v2481
      %v2566 = vsub.f32 0.0, %v2484
      %v2567 = vsub.f32 0.0, %v2489
      %v2568 = vsub.f32 0.0, %v2492
      %v2569 = vsub.f32 0.0, %v2497
      %v2570 = vsub.f32 0.0, %v2500
      %v2571 = vsub.f32 0.0, %v2505
      %v2572 = vsub.f32 0.0, %v2508
      %v2573 = vsub.f32 0.0, %v2513
      %v2574 = vsub.f32 0.0, %v2516
      %v2575 = vsub.f32 0.0, %v2521
      %v2576 = vsub.f32 0.0, %v2524
      %v2577 = vsub.f32 0.0, %v2529
      %v2578 = vsub.f32 0.0, %v2532
      %v2579 = vsub.f32 0.0, %v2537
      %v2580 = vsub.f32 0.0, %v2540
      %v2581 = vsub.f32 0.0, %v2545
      %v2582 = vsub.f32 0.0, %v2548
      %v2583 = vmul.f32 %v2551, 1.442695
      %v2584 = vpow.pop %v2583
      %v2585 = vmul.f32 %v2552, 1.442695
      %v2586 = vpow.pop %v2585
      %v2587 = vmul.f32 %v2553, 1.442695
      %v2588 = vpow.pop %v2587
      %v2589 = vmul.f32 %v2554, 1.442695
      %v2590 = vpow.pop %v2589
      %v2591 = vmul.f32 %v2555, 1.442695
      %v2592 = vpow.pop %v2591
      %v2593 = vmul.f32 %v2556, 1.442695
      %v2594 = vpow.pop %v2593
      %v2595 = vmul.f32 %v2557, 1.442695
      %v2596 = vpow.pop %v2595
      %v2597 = vmul.f32 %v2558, 1.442695
      %v2598 = vpow.pop %v2597
      %v2599 = vmul.f32 %v2559, 1.442695
      %v2600 = vpow.pop %v2599
      %v2601 = vmul.f32 %v2560, 1.442695
      %v2602 = vpow.pop %v2601
      %v2603 = vmul.f32 %v2561, 1.442695
      %v2604 = vpow.pop %v2603
      %v2605 = vmul.f32 %v2562, 1.442695
      %v2606 = vpow.pop %v2605
      %v2607 = vmul.f32 %v2563, 1.442695
      %v2608 = vpow.pop %v2607
      %v2609 = vmul.f32 %v2564, 1.442695
      %v2610 = vpow.pop %v2609
      %v2611 = vmul.f32 %v2565, 1.442695
      %v2612 = vpow.pop %v2611
      %v2613 = vmul.f32 %v2566, 1.442695
      %v2614 = vpow.pop %v2613
      %v2615 = vmul.f32 %v2567, 1.442695
      %v2616 = vpow.pop %v2615
      %v2617 = vmul.f32 %v2568, 1.442695
      %v2618 = vpow.pop %v2617
      %v2619 = vmul.f32 %v2569, 1.442695
      %v2620 = vpow.pop %v2619
      %v2621 = vmul.f32 %v2570, 1.442695
      %v2622 = vpow.pop %v2621
      %v2623 = vmul.f32 %v2571, 1.442695
      %v2624 = vpow.pop %v2623
      %v2625 = vmul.f32 %v2572, 1.442695
      %v2626 = vpow.pop %v2625
      %v2627 = vmul.f32 %v2573, 1.442695
      %v2628 = vpow.pop %v2627
      %v2629 = vmul.f32 %v2574, 1.442695
      %v2630 = vpow.pop %v2629
      %v2631 = vmul.f32 %v2575, 1.442695
      %v2632 = vpow.pop %v2631
      %v2633 = vmul.f32 %v2576, 1.442695
      %v2634 = vpow.pop %v2633
      %v2635 = vmul.f32 %v2577, 1.442695
      %v2636 = vpow.pop %v2635
      %v2637 = vmul.f32 %v2578, 1.442695
      %v2638 = vpow.pop %v2637
      %v2639 = vmul.f32 %v2579, 1.442695
      %v2640 = vpow.pop %v2639
      %v2641 = vmul.f32 %v2580, 1.442695
      %v2642 = vpow.pop %v2641
      %v2643 = vmul.f32 %v2581, 1.442695
      %v2644 = vpow.pop %v2643
      %v2645 = vmul.f32 %v2582, 1.442695
      %v2646 = vpow.pop %v2645
      %v2647 = vadd.f32 %v2584, 1.0
      %v2648 = vadd.f32 %v2586, 1.0
      %v2649 = vadd.f32 %v2588, 1.0
      %v2650 = vadd.f32 %v2590, 1.0
      %v2651 = vadd.f32 %v2592, 1.0
      %v2652 = vadd.f32 %v2594, 1.0
      %v2653 = vadd.f32 %v2596, 1.0
      %v2654 = vadd.f32 %v2598, 1.0
      %v2655 = vadd.f32 %v2600, 1.0
      %v2656 = vadd.f32 %v2602, 1.0
      %v2657 = vadd.f32 %v2604, 1.0
      %v2658 = vadd.f32 %v2606, 1.0
      %v2659 = vadd.f32 %v2608, 1.0
      %v2660 = vadd.f32 %v2610, 1.0
      %v2661 = vadd.f32 %v2612, 1.0
      %v2662 = vadd.f32 %v2614, 1.0
      %v2663 = vadd.f32 %v2616, 1.0
      %v2664 = vadd.f32 %v2618, 1.0
      %v2665 = vadd.f32 %v2620, 1.0
      %v2666 = vadd.f32 %v2622, 1.0
      %v2667 = vadd.f32 %v2624, 1.0
      %v2668 = vadd.f32 %v2626, 1.0
      %v2669 = vadd.f32 %v2628, 1.0
      %v2670 = vadd.f32 %v2630, 1.0
      %v2671 = vadd.f32 %v2632, 1.0
      %v2672 = vadd.f32 %v2634, 1.0
      %v2673 = vadd.f32 %v2636, 1.0
      %v2674 = vadd.f32 %v2638, 1.0
      %v2675 = vadd.f32 %v2640, 1.0
      %v2676 = vadd.f32 %v2642, 1.0
      %v2677 = vadd.f32 %v2644, 1.0
      %v2678 = vadd.f32 %v2646, 1.0
      %v2679 = vrcp.pop %v2647
      %v2680 = vrcp.pop %v2648
      %v2681 = vrcp.pop %v2649
      %v2682 = vrcp.pop %v2650
      %v2683 = vrcp.pop %v2651
      %v2684 = vrcp.pop %v2652
      %v2685 = vrcp.pop %v2653
      %v2686 = vrcp.pop %v2654
      %v2687 = vrcp.pop %v2655
      %v2688 = vrcp.pop %v2656
      %v2689 = vrcp.pop %v2657
      %v2690 = vrcp.pop %v2658
      %v2691 = vrcp.pop %v2659
      %v2692 = vrcp.pop %v2660
      %v2693 = vrcp.pop %v2661
      %v2694 = vrcp.pop %v2662
      %v2695 = vrcp.pop %v2663
      %v2696 = vrcp.pop %v2664
      %v2697 = vrcp.pop %v2665
      %v2698 = vrcp.pop %v2666
      %v2699 = vrcp.pop %v2667
      %v2700 = vrcp.pop %v2668
      %v2701 = vrcp.pop %v2669
      %v2702 = vrcp.pop %v2670
      %v2703 = vrcp.pop %v2671
      %v2704 = vrcp.pop %v2672
      %v2705 = vrcp.pop %v2673
      %v2706 = vrcp.pop %v2674
      %v2707 = vrcp.pop %v2675
      %v2708 = vrcp.pop %v2676
      %v2709 = vrcp.pop %v2677
      %v2710 = vrcp.pop %v2678
      %v2711 = vmul.f32 %v2425, %v2679
      %v2712 = vmul.f32 %v2428, %v2680
      %v2713 = vmul.f32 %v2433, %v2681
      %v2714 = vmul.f32 %v2436, %v2682
      %v2715 = vmul.f32 %v2441, %v2683
      %v2716 = vmul.f32 %v2444, %v2684
      %v2717 = vmul.f32 %v2449, %v2685
      %v2718 = vmul.f32 %v2452, %v2686
      %v2719 = vmul.f32 %v2457, %v2687
      %v2720 = vmul.f32 %v2460, %v2688
      %v2721 = vmul.f32 %v2465, %v2689
      %v2722 = vmul.f32 %v2468, %v2690
      %v2723 = vmul.f32 %v2473, %v2691
      %v2724 = vmul.f32 %v2476, %v2692
      %v2725 = vmul.f32 %v2481, %v2693
      %v2726 = vmul.f32 %v2484, %v2694
      %v2727 = vmul.f32 %v2489, %v2695
      %v2728 = vmul.f32 %v2492, %v2696
      %v2729 = vmul.f32 %v2497, %v2697
      %v2730 = vmul.f32 %v2500, %v2698
      %v2731 = vmul.f32 %v2505, %v2699
      %v2732 = vmul.f32 %v2508, %v2700
      %v2733 = vmul.f32 %v2513, %v2701
      %v2734 = vmul.f32 %v2516, %v2702
      %v2735 = vmul.f32 %v2521, %v2703
      %v2736 = vmul.f32 %v2524, %v2704
      %v2737 = vmul.f32 %v2529, %v2705
      %v2738 = vmul.f32 %v2532, %v2706
      %v2739 = vmul.f32 %v2537, %v2707
      %v2740 = vmul.f32 %v2540, %v2708
      %v2741 = vmul.f32 %v2545, %v2709
      %v2742 = vmul.f32 %v2548, %v2710
      %vm2743 = vcmask 130048
      %2744 = vst.msk [vmem:[%s192] sm:$0xff] %vm2743, %v2711
      %2745 = vst.msk [vmem:[%s192 + $0x8] sm:$0xff] %vm2743, %v2712
      %2746 = vst.msk [vmem:[%s192 + $0x10] sm:$0xff] %vm2743, %v2713
      %2747 = vst.msk [vmem:[%s192 + $0x18] sm:$0xff] %vm2743, %v2714
      %2748 = vst.msk [vmem:[%s192 + $0x20] sm:$0xff] %vm2743, %v2715
      %2749 = vst.msk [vmem:[%s192 + $0x28] sm:$0xff] %vm2743, %v2716
      %2750 = vst.msk [vmem:[%s192 + $0x30] sm:$0xff] %vm2743, %v2717
      %2751 = vst.msk [vmem:[%s192 + $0x38] sm:$0xff] %vm2743, %v2718
      %2752 = vst.msk [vmem:[%s192 + $0x40] sm:$0xff] %vm2743, %v2719
      %2753 = vst.msk [vmem:[%s192 + $0x48] sm:$0xff] %vm2743, %v2720
      %2754 = vst.msk [vmem:[%s192 + $0x50] sm:$0xff] %vm2743, %v2721
      %2755 = vst.msk [vmem:[%s192 + $0x58] sm:$0xff] %vm2743, %v2722
      %2756 = vst.msk [vmem:[%s192 + $0x60] sm:$0xff] %vm2743, %v2723
      %2757 = vst.msk [vmem:[%s192 + $0x68] sm:$0xff] %vm2743, %v2724
      %2758 = vst.msk [vmem:[%s192 + $0x70] sm:$0xff] %vm2743, %v2725
      %2759 = vst.msk [vmem:[%s192 + $0x78] sm:$0xff] %vm2743, %v2726
      %2760 = vst.msk [vmem:[%s192 + $0x80] sm:$0xff] %vm2743, %v2727
      %2761 = vst.msk [vmem:[%s192 + $0x88] sm:$0xff] %vm2743, %v2728
      %2762 = vst.msk [vmem:[%s192 + $0x90] sm:$0xff] %vm2743, %v2729
      %2763 = vst.msk [vmem:[%s192 + $0x98] sm:$0xff] %vm2743, %v2730
      %2764 = vst.msk [vmem:[%s192 + $0xa0] sm:$0xff] %vm2743, %v2731
      %2765 = vst.msk [vmem:[%s192 + $0xa8] sm:$0xff] %vm2743, %v2732
      %2766 = vst.msk [vmem:[%s192 + $0xb0] sm:$0xff] %vm2743, %v2733
      %2767 = vst.msk [vmem:[%s192 + $0xb8] sm:$0xff] %vm2743, %v2734
      %2768 = vst.msk [vmem:[%s192 + $0xc0] sm:$0xff] %vm2743, %v2735
      %2769 = vst.msk [vmem:[%s192 + $0xc8] sm:$0xff] %vm2743, %v2736
      %2770 = vst.msk [vmem:[%s192 + $0xd0] sm:$0xff] %vm2743, %v2737
      %2771 = vst.msk [vmem:[%s192 + $0xd8] sm:$0xff] %vm2743, %v2738
      %2772 = vst.msk [vmem:[%s192 + $0xe0] sm:$0xff] %vm2743, %v2739
      %2773 = vst.msk [vmem:[%s192 + $0xe8] sm:$0xff] %vm2743, %v2740
      %2774 = vst.msk [vmem:[%s192 + $0xf0] sm:$0xff] %vm2743, %v2741
      %2775 = vst.msk [vmem:[%s192 + $0xf8] sm:$0xff] %vm2743, %v2742
      %s2776 = smul.u32 32, %s19
      %p2777 = scmp.lt.s32.totalorder %s18, 1
      %s2778 = scalar_select %p2777, %s18, 1
      %p2779 = scmp.lt.s32.totalorder %s2776, 31
      %s2780 = scalar_select %p2779, %s2776, 31
      %s2781 = smul.addr %s2778, 32
      %s2782 = sadd.s32 %s2780, %s2781
      %s2783 = smul.addr %s2782, 8
      %s2784 = scalar_lea.vmem %s3, %s2783
      // Predicated region
      $region33: #{_forward_impl.1} parent=31 // pred_check
        %p2785 = pneg %p114
      $region34: #{_forward_impl.1} parent=31 // pred_check_branch
        %2787 = sbr.rel (%p2785) target = $region36
      $region35: #{_forward_impl.1} parent=31 // pred_region
        %s2788 = smul.u32 32, %s19
      $region36: #{_forward_impl.1} parent=31 // pred_fallthru
        _
    $region32: #{_forward_impl.1} parent=5 // pred_fallthru
      _
    %p2789 = scmp.le.s32.totalorder 2, %s9
    // Predicated region
    $region37: #{_forward_impl.1} parent=5 // pred_check
      %p2790 = pneg %p2789
    $region38: #{_forward_impl.1} parent=5 // pred_check_branch
      %2792 = sbr.rel (%p2790) target = $region40
    $region39: #{_forward_impl.1} parent=5 // pred_region
      %s2793 = ssub.s32 %s9, 2
      // Predicated region
      $region41: #{_forward_impl.1} parent=39 // pred_check
        %p2794 = pneg %p120
      $region42: #{_forward_impl.1} parent=39 // pred_check_branch
        %2796 = sbr.rel (%p2794) target = $region44
      $region43: #{_forward_impl.1} parent=39 // pred_region
        %s2797 = smul.u32 32, %s21
        %p2798 = scmp.lt.s32.totalorder %s20, 1
        %s2799 = scalar_select %p2798, %s20, 1
        %p2800 = scmp.lt.s32.totalorder %s2797, 31
        %s2801 = scalar_select %p2800, %s2797, 31
        %s2802 = smul.addr %s2799, 32
        %s2803 = sadd.s32 %s2801, %s2802
        %s2804 = smul.addr %s2803, 8
        %s2805 = scalar_lea.vmem %s3, %s2804
      $region44: #{_forward_impl.1} parent=39 // pred_fallthru
        _
    $region40: #{_forward_impl.1} parent=5 // pred_fallthru
      _
  $region6: #{_forward_impl.1} parent=0 // loop_footer
    %s13 = sadd.s32 1, %s9
  $region7: #{_forward_impl.1} parent=0 // loop_footer_branch
    %8 = sbr.rel target = $region3
  $region8: #{_forward_impl.1} parent=0 // loop_exit
    _

</llo_original>
